<compile_context>
chip_gen: v6e
topology: v6e:2x2x1
jax: 0.10.0
libtpu: 0.0.40
codegen_flags: <defaults>
</compile_context>

<pallas_src>
import math
import numpy as np
import jax
import jax.numpy as jnp
from jax.experimental import pallas as pl
from jax.experimental.pallas import tpu as pltpu

LANE = 128
NEG = -1e30       # finite stand-in for -inf (exp underflows to 0, no NaN paths)
TINY = 1e-37      # log() floor; real contraction rows are always >= 1e-10


def _round_up(x, n):
    return ((x + n - 1) // n) * n


# ----------------------------------------------------------------------------
# Parameter construction (mirrors Flow.__init__, 'clamp-zero', 'tanh')
# ----------------------------------------------------------------------------
def lower_dimensional_weight(key, out, inp, std, d):
    W = np.zeros((out, inp), dtype=np.float32)
    ob, ib = out // d, inp // d
    for i in range(d):
        key, k1, k2 = jax.random.split(key, 3)
        diag = np.abs(np.asarray(jax.random.normal(k1, (ob, ib), jnp.float32))) * std
        W[i * ob:(i + 1) * ob, i * ib:(i + 1) * ib] = np.clip(diag, 1e-10, None)
        if i > 0:
            low = np.asarray(jax.random.normal(k2, (ob, i * ib), jnp.float32)) * std
            W[i * ob:(i + 1) * ob, :i * ib] = low
    return W


def lower_mask_np(out, inp, d):
    M = np.zeros((out, inp), np.float32)
    ob, ib = out // d, inp // d
    for i in range(d):
        M[i * ob:(i + 1) * ob, :(i + 1) * ib] = 1.0
    return M


def diag_mask_np(out, inp, d):
    M = np.zeros((out, inp), np.float32)
    ob, ib = out // d, inp // d
    for i in range(d):
        M[i * ob:(i + 1) * ob, i * ib:(i + 1) * ib] = 1.0
    return M


def build_params(key, L, d, m, std_a, initialization):
    def give_std(n):
        return 1.0 if initialization == 'standard-normal' else 1.0 / np.sqrt(n)

    keys = jax.random.split(key, 2 * L + 2)
    ki = 0
    Ws = [lower_dimensional_weight(keys[ki], m[0] * d, d, give_std(m[0]), d)]
    ki += 1
    for i in range(L - 1):
        Ws.append(lower_dimensional_weight(keys[ki], m[i + 1] * d, m[i] * d,
                                           give_std(m[i + 1]), d))
        ki += 1
    Ws.append(lower_dimensional_weight(keys[ki], d, m[L - 1] * d, std_a, d))
    ki += 1
    bs = []
    for i in range(L):
        bs.append(np.asarray(jax.random.normal(keys[ki], (m[i] * d,), jnp.float32))
                  * give_std(m[i]))
        ki += 1
    # NOTE: the module's `gate` parameter and `parameterization` are unused in
    # forward(), so they are not materialized here.
    return Ws, bs


# ----------------------------------------------------------------------------
# Host-side kernel-input prep (lane-padded, nc / L*log(nc) folded in):
#   Wt[i] : (in_pads[i], out_pads[i]) lower-masked weight^T, scaled by nc for
#           i >= 1 (absorbs the previous layer's `nc * tanh`)     -> bf16 path
#   Wd[i] : (in_pads[i], out_pads[i]) diag-block weight^T, zero off-block
#           (f32 MXU operand of the log-domain contraction)
#   b[i]  : (1, out_pads[i]) bias (zeros in pad lanes)
#   ld0   : (1, out_pads[0]) layer-0 per-row log diag weight + L*log(nc)
# ----------------------------------------------------------------------------
def derive_kernel_inputs(Ws, bs, L, d, m, nc):
    # v6e note (perf review): hidden dims >= 256 get 256-alignment so operands
    # map onto full 256x256 MXU passes; otherwise standard 128-lane alignment.
    align = 256 if max(mi * d for mi in m) >= 256 else LANE
    HPAD = [_round_up(m[i] * d, align) for i in range(L)]
    OUTW = _round_up(d + 1, LANE)            # packed output: [:d]=out, [d]=logdet
    in_pads = [d] + HPAD                     # x is passed un-padded (K=d matmul)
    out_pads = HPAD + [OUTW]

    Wt, Wd, b2d = [], [], []
    for i, W in enumerate(Ws):
        o, p = W.shape
        scale = 1.0 if i == 0 else nc        # fold previous layer's nc here
        wt = np.zeros((in_pads[i], out_pads[i]), np.float32)
        wt[:p, :o] = (scale * (W * lower_mask_np(o, p, d))).T
        Wt.append(wt)
        wd = np.zeros((in_pads[i], out_pads[i]), np.float32)
        wd[:p, :o] = (W * diag_mask_np(o, p, d)).T   # raw diag (log-domain path)
        Wd.append(wd)
    for i, b in enumerate(bs):
        bp = np.zeros((1, out_pads[i]), np.float32)
        bp[0, :b.shape[0]] = b
        b2d.append(bp)
    m0 = m[0]
    ld0 = np.full((1, out_pads[0]), NEG, np.float32)
    ld0[0, :m0 * d] = (np.log(np.array([Ws[0][r, r // m0] for r in range(m0 * d)],
                                       np.float32))
                       + np.float32(L * math.log(nc)))   # commutes through LSEs
    return Wt, Wd, b2d, ld0, in_pads, out_pads, OUTW


# ----------------------------------------------------------------------------
# Pallas kernel
# ----------------------------------------------------------------------------
def make_flow_kernel(L, TB, d, m, in_pads, out_pads, OUTW, mm_dtype):
    log2 = math.log(2.0)

    def kernel(*refs):
        it = iter(refs)
        x_ref = next(it)
        ld0_ref = next(it)
        wt0_ref, b0_ref = next(it), next(it)
        hidden = [(next(it), next(it), next(it)) for _ in range(L - 1)]
        wtL_ref, wdL_ref = next(it), next(it)
        out_ref = next(it)

        # Hoisted / memoized lane iotas and block masks: built once per distinct
        # width in the whole unrolled trace (JAX does not CSE broadcast_in_dim).
        iota_cache, mask_cache = {}, {}

        def lane_iota(width):
            if width not in iota_cache:
                iota_cache[width] = jax.lax.broadcasted_iota(
                    jnp.int32, (TB, width), 1)
            return iota_cache[width]

        def block_masks(width, blk):
            key = (width, blk)
            if key not in mask_cache:
                lane = lane_iota(width)
                mask_cache[key] = [(lane >= j * blk) & (lane < (j + 1) * blk)
                                   for j in range(d)]
            return mask_cache[key]

        def log_contract(grad, wd, w_in, blk_in, w_out, blk_out):
            """Block-diagonal logsumexp contraction, max-stabilised, on the MXU:
                 grad_new[q] = log( sum_p Wd[p,q] * exp(grad[p] - max_blk(p)) )
                               + max_blk(q)
            Kept strictly f32 (bf16 here would corrupt logdet).  Off-block /
            padding columns of Wd are zero and padded grad lanes sit far below
            their block max, so neither contributes."""
            mi = block_masks(w_in, blk_in)
            mo = block_masks(w_out, blk_out)
            gmax_in = jnp.zeros((TB, w_in), jnp.float32)
            gmax_out = jnp.zeros((TB, w_out), jnp.float32)
            for j in range(d):                                   # d is small
                bm = jnp.max(jnp.where(mi[j], grad, NEG), axis=-1, keepdims=True)
                gmax_in = jnp.where(mi[j], bm, gmax_in)
                gmax_out = jnp.where(mo[j], bm, gmax_out)
            e = jnp.exp(grad - gmax_in)                          # pads -> 0
            r = jnp.dot(e, wd, preferred_element_type=jnp.float32)
            return jnp.log(jnp.maximum(r, TINY)) + gmax_out

        out = x_ref[...]                                         # (TB, d) f32
        grad = jnp.broadcast_to(ld0_ref[...], (TB, out_pads[0]))
        for i in range(L):
            if i == 0:
                wt_ref, b_ref = wt0_ref, b0_ref
            else:
                wt_ref, b_ref, wd_ref = hidden[i - 1]
                grad = log_contract(grad, wd_ref[...],
                                    in_pads[i], m[i - 1], out_pads[i], m[i])
            # forward matmul in mm_dtype (bf16 fast path) with f32 accumulation
            z = jnp.dot(out.astype(mm_dtype), wt_ref[...],
                        preferred_element_type=jnp.float32) + b_ref[...]
            az = jnp.abs(z)
            em = jnp.exp(-2.0 * az)
            lga = 2.0 * (log2 - az - jnp.log1p(em))  # log d tanh/dz (stable)
            out = jnp.tanh(z)        # nc folded into the next layer's weight
            grad = grad + lga        # L*log(nc) folded into ld0

        # final (zero-bias) linear layer + final block contraction
        gfin = log_contract(grad, wdL_ref[...],
                            in_pads[L], m[L - 1], out_pads[L], 1)   # (TB, OUTW)
        out = jnp.dot(out.astype(mm_dtype), wtL_ref[...],
                      preferred_element_type=jnp.float32)           # (TB, OUTW)
        lane = lane_iota(OUTW)
        logdet = jnp.sum(jnp.where(lane < d, gfin, 0.0), axis=-1,
                         keepdims=True)                             # (TB, 1)
        # pack lane-dense output: cols [0,d) = out, col d = logdet
        out_ref[...] = jnp.where(lane == d, logdet, out)

    return kernel


def _vmem_capacity_bytes():
    try:
        return int(pltpu.get_tpu_info().vmem_capacity_bytes)
    except Exception:
        return 128 << 20     # v5e/v6e physical; conservative fallback


def flow_forward_pallas(x, Ws, bs, L, d, m, nc, batch_tile=None, use_bf16=True):
    """Flow.forward as a single batch-tiled Pallas call.

    use_bf16=True runs the two forward (activation-path) matmuls in bf16 on the
    MXU with f32 accumulation; the logsumexp contraction always stays f32.
    """
    mm_dtype = jnp.bfloat16 if use_bf16 else jnp.float32
    B = x.shape[0]
    Wt, Wd, b2d, ld0, in_pads, out_pads, OUTW = \
        derive_kernel_inputs(Ws, bs, L, d, m, nc)

    vmem_cap = _vmem_capacity_bytes()
    if batch_tile is None:
        # v7x: 64 MiB/TC and the "parallel" grid axis keeps a full weight copy
        # per core -> start with a smaller batch tile there.
        batch_tile = 128 if vmem_cap <= (64 << 20) else 256
    TB = batch_tile if B >= batch_tile else _round_up(B, 8)
    B_pad = _round_up(B, TB)

    xp = jnp.zeros((B_pad, d), jnp.float32).at[:B, :].set(
        jnp.asarray(x, jnp.float32))

    inputs = [xp, jnp.asarray(ld0),
              jnp.asarray(Wt[0], mm_dtype), jnp.asarray(b2d[0])]
    for i in range(1, L):
        inputs += [jnp.asarray(Wt[i], mm_dtype), jnp.asarray(b2d[i]),
                   jnp.asarray(Wd[i])]
    inputs += [jnp.asarray(Wt[L], mm_dtype), jnp.asarray(Wd[L])]

    # Explicit VMEM budget: resident weights (x2 = worst-case buffering) +
    # double-buffered x/out tiles + live f32 temporaries / spill headroom.
    resident = sum(int(np.prod(a.shape)) * a.dtype.itemsize for a in inputs[1:])
    tiles = 2 * TB * d * 4 + 2 * TB * OUTW * 4
    temps = 14 * TB * max(out_pads) * 4
    vmem_limit = 2 * resident + tiles + temps + (8 << 20)
    vmem_limit = int(min(max(vmem_limit, 32 << 20), vmem_cap - (4 << 20)))

    kernel = make_flow_kernel(L, TB, d, m, in_pads, out_pads, OUTW, mm_dtype)
    out_shape = jax.ShapeDtypeStruct((B_pad, OUTW), jnp.float32)
    x_spec = pl.BlockSpec((TB, d), lambda b: (b, 0))
    out_spec = pl.BlockSpec((TB, OUTW), lambda b: (b, 0))

    def build(single_buffer):
        def resident_spec(arr):
            kw = {"pipeline_mode": pl.Buffered(1)} if single_buffer else {}
            # whole array, same block every step -> DMA'd once, stays in VMEM
            return pl.BlockSpec(arr.shape, lambda b: (0,) * arr.ndim, **kw)
        in_specs = [x_spec] + [resident_spec(a) for a in inputs[1:]]
        return pl.pallas_call(
            kernel,
            out_shape=out_shape,
            grid_spec=pltpu.PrefetchScalarGridSpec(
                num_scalar_prefetch=0,
                grid=(B_pad // TB,),
                in_specs=in_specs,
                out_specs=out_spec),
            compiler_params=pltpu.CompilerParams(
                dimension_semantics=("parallel",),
                vmem_limit_bytes=vmem_limit))

    try:
        # constant-index_map weights need no double buffer -> single-buffer them
        res = build(single_buffer=True)(*inputs)
    except Exception:
        # pipeline_mode / Buffered(1) unsupported on this build -> default buffering
        res = build(single_buffer=False)(*inputs)
    return res[:B, :d], res[:B, d]


# ----------------------------------------------------------------------------
# Pure numpy reference (mirrors the PyTorch forward exactly)
# ----------------------------------------------------------------------------
def _softplus_np(x):
    return np.maximum(x, 0.0) + np.log1p(np.exp(-np.abs(x)))


def _lse_np(x, axis):
    mx = np.max(x, axis=axis, keepdims=True)
    return np.squeeze(mx + np.log(np.sum(np.exp(x - mx), axis=axis, keepdims=True)),
                      axis=axis)


def flow_forward_ref(x, Ws, bs, L, d, m, nc):
    x = np.asarray(x, np.float64)
    B = x.shape[0]
    out = x
    grad = None
    for i in range(L + 1):
        W = np.asarray(Ws[i], np.float64)
        o, p = W.shape
        out_dim, inp_dim = o // d, p // d
        Wm = W * lower_mask_np(o, p, d)
        dm = diag_mask_np(o, p, d).astype(bool)
        logdiag = np.log(W[dm]).reshape(d, out_dim, inp_dim)
        log_grad = np.broadcast_to(logdiag[None], (B, d, out_dim, inp_dim))
        if grad is None:
            grad = log_grad
        else:
            t = log_grad[:, :, :, None, :] + \
                np.transpose(grad, (0, 1, 3, 2))[:, :, None, :, :]
            grad = _lse_np(t, axis=-1)
        if i < L:
            z = out @ Wm.T + np.asarray(bs[i], np.float64)
            lga = 2.0 * (np.log(2.0) - z - _softplus_np(-2.0 * z))
            out = nc * np.tanh(z)
            grad = grad + lga.reshape(grad.shape) + np.log(nc)
        else:
            out = out @ Wm.T
    return out, grad.squeeze().sum(-1)


# ----------------------------------------------------------------------------
if __name__ == "__main__":
    # Small config consistent with Flow(__init__): d=4, 2 hidden layers of 8
    # nodes each, batch 8, initialization 'standard-normal', std_a=1.0.
    B, d, L = 8, 4, 2
    m = [8, 8]
    initialization = 'standard-normal'
    std_a = 1.0
    nc = 1.0 / np.sqrt(m[0])  # get_normalizing_const() for 'standard-normal'

    key = jax.random.PRNGKey(0)
    kx, kp = jax.random.split(key)
    x = jax.random.normal(kx, (B, d), jnp.float32)

    Ws, bs = build_params(kp, L, d, m, std_a, initialization)
    out_ref, logdet_ref = flow_forward_ref(np.asarray(x), Ws, bs, L, d, m, nc)

    # 1) exact-precision variant: must match the module to f32 accuracy
    out32, ld32 = flow_forward_pallas(x, Ws, bs, L, d, m, nc, use_bf16=False)
    jax.block_until_ready(out32)
    jax.block_until_ready(ld32)
    assert np.allclose(np.asarray(out32), out_ref, rtol=1e-3, atol=1e-3), \
        (np.asarray(out32), out_ref)
    assert np.allclose(np.asarray(ld32), logdet_ref, rtol=1e-3, atol=1e-3), \
        (np.asarray(ld32), logdet_ref)

    # 2) bf16-MXU fast path (perf-review opt 1): forward matmuls in bf16, the
    #    logsumexp contraction stays f32.  Tolerance is sized for bf16 operand
    #    rounding (~0.4% per product) accumulated over L+1 layers; the strict
    #    1e-3 semantic check is the f32 variant above.
    out16, ld16 = flow_forward_pallas(x, Ws, bs, L, d, m, nc, use_bf16=True)
    jax.block_until_ready(out16)
    jax.block_until_ready(ld16)
    assert np.allclose(np.asarray(out16), out_ref, rtol=5e-2, atol=1e-1), \
        (np.asarray(out16), out_ref)
    assert np.allclose(np.asarray(ld16), logdet_ref, rtol=5e-2, atol=1e-1), \
        (np.asarray(ld16), logdet_ref)

    print("KERNEL_OK")
</pallas_src>

<mosaic_0001>
module attributes {stable_mosaic.version = 11 : i64} {
  func.func @kernel(%arg0: i32, %arg1: memref<8x4xf32, #tpu.memory_space<vmem>>, %arg2: memref<1x128xf32, #tpu.memory_space<vmem>>, %arg3: memref<4x128xf32, #tpu.memory_space<vmem>>, %arg4: memref<1x128xf32, #tpu.memory_space<vmem>>, %arg5: memref<128x128xf32, #tpu.memory_space<vmem>>, %arg6: memref<1x128xf32, #tpu.memory_space<vmem>>, %arg7: memref<128x128xf32, #tpu.memory_space<vmem>>, %arg8: memref<128x128xf32, #tpu.memory_space<vmem>>, %arg9: memref<128x128xf32, #tpu.memory_space<vmem>>, %arg10: memref<8x128xf32, #tpu.memory_space<vmem>>) attributes {dimension_semantics = [#tpu.dimension_semantics<parallel>], iteration_bounds = array<i64: 1>, scalar_prefetch = 0 : i64, scratch_operands = 0 : i64, tpu.core_type = #tpu.core_type<tc>, window_params = [{transform_indices = @transform_0, window_bounds = array<i64: 8, 4>}, {pipeline_mode = #tpu.pipeline_mode<synchronous>, transform_indices = @transform_1, window_bounds = array<i64: 1, 128>}, {pipeline_mode = #tpu.pipeline_mode<synchronous>, transform_indices = @transform_2, window_bounds = array<i64: 4, 128>}, {pipeline_mode = #tpu.pipeline_mode<synchronous>, transform_indices = @transform_3, window_bounds = array<i64: 1, 128>}, {pipeline_mode = #tpu.pipeline_mode<synchronous>, transform_indices = @transform_4, window_bounds = array<i64: 128, 128>}, {pipeline_mode = #tpu.pipeline_mode<synchronous>, transform_indices = @transform_5, window_bounds = array<i64: 1, 128>}, {pipeline_mode = #tpu.pipeline_mode<synchronous>, transform_indices = @transform_6, window_bounds = array<i64: 128, 128>}, {pipeline_mode = #tpu.pipeline_mode<synchronous>, transform_indices = @transform_7, window_bounds = array<i64: 128, 128>}, {pipeline_mode = #tpu.pipeline_mode<synchronous>, transform_indices = @transform_8, window_bounds = array<i64: 128, 128>}, {transform_indices = @transform_9, window_bounds = array<i64: 8, 128>}]} {
    %c0 = arith.constant 0 : index
    %c0_0 = arith.constant 0 : index
    %0 = vector.load %arg1[%c0, %c0_0] : memref<8x4xf32, #tpu.memory_space<vmem>>, vector<8x4xf32>
    %c0_1 = arith.constant 0 : index
    %c0_2 = arith.constant 0 : index
    %1 = vector.load %arg2[%c0_1, %c0_2] : memref<1x128xf32, #tpu.memory_space<vmem>>, vector<1x128xf32>
    %2 = vector.shape_cast %1 : vector<1x128xf32> to vector<1x128xf32>
    %3 = vector.broadcast %2 : vector<1x128xf32> to vector<8x128xf32>
    %c0_3 = arith.constant 0 : index
    %c0_4 = arith.constant 0 : index
    %4 = vector.load %arg3[%c0_3, %c0_4] : memref<4x128xf32, #tpu.memory_space<vmem>>, vector<4x128xf32>
    %cst = arith.constant dense<0.000000e+00> : vector<8x128xf32>
    %5 = tpu.matmul %0, %4, %cst {dimension_numbers = #tpu.dot_dimension_numbers<[1], [0], [0], [1], [0, 0, 1, 1], [], []>} : vector<8x4xf32>, vector<4x128xf32>, vector<8x128xf32> -> vector<8x128xf32>
    %c0_5 = arith.constant 0 : index
    %c0_6 = arith.constant 0 : index
    %6 = vector.load %arg4[%c0_5, %c0_6] : memref<1x128xf32, #tpu.memory_space<vmem>>, vector<1x128xf32>
    %7 = vector.broadcast %6 : vector<1x128xf32> to vector<8x128xf32>
    %8 = arith.addf %5, %7 : vector<8x128xf32>
    %9 = math.absf %8 : vector<8x128xf32>
    %cst_7 = arith.constant -2.000000e+00 : f32
    %10 = vector.broadcast %cst_7 : f32 to vector<8x128xf32>
    %11 = arith.mulf %10, %9 : vector<8x128xf32>
    %12 = math.exp %11 : vector<8x128xf32>
    %cst_8 = arith.constant 0.693147182 : f32
    %13 = vector.broadcast %cst_8 : f32 to vector<8x128xf32>
    %14 = arith.subf %13, %9 : vector<8x128xf32>
    %15 = math.log1p %12 : vector<8x128xf32>
    %16 = arith.subf %14, %15 : vector<8x128xf32>
    %cst_9 = arith.constant 2.000000e+00 : f32
    %17 = vector.broadcast %cst_9 : f32 to vector<8x128xf32>
    %18 = arith.mulf %17, %16 : vector<8x128xf32>
    %19 = math.tanh %8 : vector<8x128xf32>
    %20 = arith.addf %3, %18 : vector<8x128xf32>
    %c0_10 = arith.constant 0 : index
    %c0_11 = arith.constant 0 : index
    %21 = vector.load %arg7[%c0_10, %c0_11] : memref<128x128xf32, #tpu.memory_space<vmem>>, vector<128x128xf32>
    %22 = tpu.iota {dimensions = array<i32: 1>} : vector<8x128xi32>
    %c0_i32 = arith.constant 0 : i32
    %23 = vector.broadcast %c0_i32 : i32 to vector<8x128xi32>
    %24 = arith.cmpi sge, %22, %23 : vector<8x128xi32>
    %c8_i32 = arith.constant 8 : i32
    %25 = vector.broadcast %c8_i32 : i32 to vector<8x128xi32>
    %26 = arith.cmpi slt, %22, %25 : vector<8x128xi32>
    %27 = arith.andi %24, %26 : vector<8x128xi1>
    %c8_i32_12 = arith.constant 8 : i32
    %28 = vector.broadcast %c8_i32_12 : i32 to vector<8x128xi32>
    %29 = arith.cmpi sge, %22, %28 : vector<8x128xi32>
    %c16_i32 = arith.constant 16 : i32
    %30 = vector.broadcast %c16_i32 : i32 to vector<8x128xi32>
    %31 = arith.cmpi slt, %22, %30 : vector<8x128xi32>
    %32 = arith.andi %29, %31 : vector<8x128xi1>
    %c16_i32_13 = arith.constant 16 : i32
    %33 = vector.broadcast %c16_i32_13 : i32 to vector<8x128xi32>
    %34 = arith.cmpi sge, %22, %33 : vector<8x128xi32>
    %c24_i32 = arith.constant 24 : i32
    %35 = vector.broadcast %c24_i32 : i32 to vector<8x128xi32>
    %36 = arith.cmpi slt, %22, %35 : vector<8x128xi32>
    %37 = arith.andi %34, %36 : vector<8x128xi1>
    %c24_i32_14 = arith.constant 24 : i32
    %38 = vector.broadcast %c24_i32_14 : i32 to vector<8x128xi32>
    %39 = arith.cmpi sge, %22, %38 : vector<8x128xi32>
    %c32_i32 = arith.constant 32 : i32
    %40 = vector.broadcast %c32_i32 : i32 to vector<8x128xi32>
    %41 = arith.cmpi slt, %22, %40 : vector<8x128xi32>
    %42 = arith.andi %39, %41 : vector<8x128xi1>
    %cst_15 = arith.constant 0.000000e+00 : f32
    %43 = vector.broadcast %cst_15 : f32 to vector<8x128xf32>
    %cst_16 = arith.constant 0.000000e+00 : f32
    %44 = vector.broadcast %cst_16 : f32 to vector<8x128xf32>
    %cst_17 = arith.constant -1.000000e+30 : f32
    %45 = vector.broadcast %cst_17 : f32 to vector<8x128xf32>
    %46 = arith.select %27, %20, %45 : vector<8x128xi1>, vector<8x128xf32>
    %cst_18 = arith.constant dense<0xFF800000> : vector<8xf32>
    %47 = vector.multi_reduction <maximumf>, %46, %cst_18 [1] : vector<8x128xf32> to vector<8xf32>
    %48 = vector.shape_cast %47 : vector<8xf32> to vector<8x1xf32>
    %49 = vector.shape_cast %48 : vector<8x1xf32> to vector<8x1xf32>
    %50 = vector.broadcast %49 : vector<8x1xf32> to vector<8x128xf32>
    %51 = arith.select %27, %50, %43 : vector<8x128xi1>, vector<8x128xf32>
    %52 = vector.shape_cast %48 : vector<8x1xf32> to vector<8x1xf32>
    %53 = vector.broadcast %52 : vector<8x1xf32> to vector<8x128xf32>
    %54 = arith.select %27, %53, %44 : vector<8x128xi1>, vector<8x128xf32>
    %cst_19 = arith.constant -1.000000e+30 : f32
    %55 = vector.broadcast %cst_19 : f32 to vector<8x128xf32>
    %56 = arith.select %32, %20, %55 : vector<8x128xi1>, vector<8x128xf32>
    %cst_20 = arith.constant dense<0xFF800000> : vector<8xf32>
    %57 = vector.multi_reduction <maximumf>, %56, %cst_20 [1] : vector<8x128xf32> to vector<8xf32>
    %58 = vector.shape_cast %57 : vector<8xf32> to vector<8x1xf32>
    %59 = vector.shape_cast %58 : vector<8x1xf32> to vector<8x1xf32>
    %60 = vector.broadcast %59 : vector<8x1xf32> to vector<8x128xf32>
    %61 = arith.select %32, %60, %51 : vector<8x128xi1>, vector<8x128xf32>
    %62 = vector.shape_cast %58 : vector<8x1xf32> to vector<8x1xf32>
    %63 = vector.broadcast %62 : vector<8x1xf32> to vector<8x128xf32>
    %64 = arith.select %32, %63, %54 : vector<8x128xi1>, vector<8x128xf32>
    %cst_21 = arith.constant -1.000000e+30 : f32
    %65 = vector.broadcast %cst_21 : f32 to vector<8x128xf32>
    %66 = arith.select %37, %20, %65 : vector<8x128xi1>, vector<8x128xf32>
    %cst_22 = arith.constant dense<0xFF800000> : vector<8xf32>
    %67 = vector.multi_reduction <maximumf>, %66, %cst_22 [1] : vector<8x128xf32> to vector<8xf32>
    %68 = vector.shape_cast %67 : vector<8xf32> to vector<8x1xf32>
    %69 = vector.shape_cast %68 : vector<8x1xf32> to vector<8x1xf32>
    %70 = vector.broadcast %69 : vector<8x1xf32> to vector<8x128xf32>
    %71 = arith.select %37, %70, %61 : vector<8x128xi1>, vector<8x128xf32>
    %72 = vector.shape_cast %68 : vector<8x1xf32> to vector<8x1xf32>
    %73 = vector.broadcast %72 : vector<8x1xf32> to vector<8x128xf32>
    %74 = arith.select %37, %73, %64 : vector<8x128xi1>, vector<8x128xf32>
    %cst_23 = arith.constant -1.000000e+30 : f32
    %75 = vector.broadcast %cst_23 : f32 to vector<8x128xf32>
    %76 = arith.select %42, %20, %75 : vector<8x128xi1>, vector<8x128xf32>
    %cst_24 = arith.constant dense<0xFF800000> : vector<8xf32>
    %77 = vector.multi_reduction <maximumf>, %76, %cst_24 [1] : vector<8x128xf32> to vector<8xf32>
    %78 = vector.shape_cast %77 : vector<8xf32> to vector<8x1xf32>
    %79 = vector.shape_cast %78 : vector<8x1xf32> to vector<8x1xf32>
    %80 = vector.broadcast %79 : vector<8x1xf32> to vector<8x128xf32>
    %81 = arith.select %42, %80, %71 : vector<8x128xi1>, vector<8x128xf32>
    %82 = vector.shape_cast %78 : vector<8x1xf32> to vector<8x1xf32>
    %83 = vector.broadcast %82 : vector<8x1xf32> to vector<8x128xf32>
    %84 = arith.select %42, %83, %74 : vector<8x128xi1>, vector<8x128xf32>
    %85 = arith.subf %20, %81 : vector<8x128xf32>
    %86 = math.exp %85 : vector<8x128xf32>
    %cst_25 = arith.constant dense<0.000000e+00> : vector<8x128xf32>
    %87 = tpu.matmul %86, %21, %cst_25 {dimension_numbers = #tpu.dot_dimension_numbers<[1], [0], [0], [1], [0, 0, 1, 1], [], []>} : vector<8x128xf32>, vector<128x128xf32>, vector<8x128xf32> -> vector<8x128xf32>
    %cst_26 = arith.constant 9.99999991E-38 : f32
    %88 = vector.broadcast %cst_26 : f32 to vector<8x128xf32>
    %89 = arith.maximumf %87, %88 : vector<8x128xf32>
    %90 = math.log %89 : vector<8x128xf32>
    %91 = arith.addf %90, %84 : vector<8x128xf32>
    %c0_27 = arith.constant 0 : index
    %c0_28 = arith.constant 0 : index
    %92 = vector.load %arg5[%c0_27, %c0_28] : memref<128x128xf32, #tpu.memory_space<vmem>>, vector<128x128xf32>
    %cst_29 = arith.constant dense<0.000000e+00> : vector<8x128xf32>
    %93 = tpu.matmul %19, %92, %cst_29 {dimension_numbers = #tpu.dot_dimension_numbers<[1], [0], [0], [1], [0, 0, 1, 1], [], []>} : vector<8x128xf32>, vector<128x128xf32>, vector<8x128xf32> -> vector<8x128xf32>
    %c0_30 = arith.constant 0 : index
    %c0_31 = arith.constant 0 : index
    %94 = vector.load %arg6[%c0_30, %c0_31] : memref<1x128xf32, #tpu.memory_space<vmem>>, vector<1x128xf32>
    %95 = vector.broadcast %94 : vector<1x128xf32> to vector<8x128xf32>
    %96 = arith.addf %93, %95 : vector<8x128xf32>
    %97 = math.absf %96 : vector<8x128xf32>
    %cst_32 = arith.constant -2.000000e+00 : f32
    %98 = vector.broadcast %cst_32 : f32 to vector<8x128xf32>
    %99 = arith.mulf %98, %97 : vector<8x128xf32>
    %100 = math.exp %99 : vector<8x128xf32>
    %cst_33 = arith.constant 0.693147182 : f32
    %101 = vector.broadcast %cst_33 : f32 to vector<8x128xf32>
    %102 = arith.subf %101, %97 : vector<8x128xf32>
    %103 = math.log1p %100 : vector<8x128xf32>
    %104 = arith.subf %102, %103 : vector<8x128xf32>
    %cst_34 = arith.constant 2.000000e+00 : f32
    %105 = vector.broadcast %cst_34 : f32 to vector<8x128xf32>
    %106 = arith.mulf %105, %104 : vector<8x128xf32>
    %107 = math.tanh %96 : vector<8x128xf32>
    %108 = arith.addf %91, %106 : vector<8x128xf32>
    %c0_35 = arith.constant 0 : index
    %c0_36 = arith.constant 0 : index
    %109 = vector.load %arg9[%c0_35, %c0_36] : memref<128x128xf32, #tpu.memory_space<vmem>>, vector<128x128xf32>
    %c0_i32_37 = arith.constant 0 : i32
    %110 = vector.broadcast %c0_i32_37 : i32 to vector<8x128xi32>
    %111 = arith.cmpi sge, %22, %110 : vector<8x128xi32>
    %c1_i32 = arith.constant 1 : i32
    %112 = vector.broadcast %c1_i32 : i32 to vector<8x128xi32>
    %113 = arith.cmpi slt, %22, %112 : vector<8x128xi32>
    %114 = arith.andi %111, %113 : vector<8x128xi1>
    %c1_i32_38 = arith.constant 1 : i32
    %115 = vector.broadcast %c1_i32_38 : i32 to vector<8x128xi32>
    %116 = arith.cmpi sge, %22, %115 : vector<8x128xi32>
    %c2_i32 = arith.constant 2 : i32
    %117 = vector.broadcast %c2_i32 : i32 to vector<8x128xi32>
    %118 = arith.cmpi slt, %22, %117 : vector<8x128xi32>
    %119 = arith.andi %116, %118 : vector<8x128xi1>
    %c2_i32_39 = arith.constant 2 : i32
    %120 = vector.broadcast %c2_i32_39 : i32 to vector<8x128xi32>
    %121 = arith.cmpi sge, %22, %120 : vector<8x128xi32>
    %c3_i32 = arith.constant 3 : i32
    %122 = vector.broadcast %c3_i32 : i32 to vector<8x128xi32>
    %123 = arith.cmpi slt, %22, %122 : vector<8x128xi32>
    %124 = arith.andi %121, %123 : vector<8x128xi1>
    %c3_i32_40 = arith.constant 3 : i32
    %125 = vector.broadcast %c3_i32_40 : i32 to vector<8x128xi32>
    %126 = arith.cmpi sge, %22, %125 : vector<8x128xi32>
    %c4_i32 = arith.constant 4 : i32
    %127 = vector.broadcast %c4_i32 : i32 to vector<8x128xi32>
    %128 = arith.cmpi slt, %22, %127 : vector<8x128xi32>
    %129 = arith.andi %126, %128 : vector<8x128xi1>
    %cst_41 = arith.constant 0.000000e+00 : f32
    %130 = vector.broadcast %cst_41 : f32 to vector<8x128xf32>
    %cst_42 = arith.constant 0.000000e+00 : f32
    %131 = vector.broadcast %cst_42 : f32 to vector<8x128xf32>
    %cst_43 = arith.constant -1.000000e+30 : f32
    %132 = vector.broadcast %cst_43 : f32 to vector<8x128xf32>
    %133 = arith.select %27, %108, %132 : vector<8x128xi1>, vector<8x128xf32>
    %cst_44 = arith.constant dense<0xFF800000> : vector<8xf32>
    %134 = vector.multi_reduction <maximumf>, %133, %cst_44 [1] : vector<8x128xf32> to vector<8xf32>
    %135 = vector.shape_cast %134 : vector<8xf32> to vector<8x1xf32>
    %136 = vector.shape_cast %135 : vector<8x1xf32> to vector<8x1xf32>
    %137 = vector.broadcast %136 : vector<8x1xf32> to vector<8x128xf32>
    %138 = arith.select %27, %137, %130 : vector<8x128xi1>, vector<8x128xf32>
    %139 = vector.shape_cast %135 : vector<8x1xf32> to vector<8x1xf32>
    %140 = vector.broadcast %139 : vector<8x1xf32> to vector<8x128xf32>
    %141 = arith.select %114, %140, %131 : vector<8x128xi1>, vector<8x128xf32>
    %cst_45 = arith.constant -1.000000e+30 : f32
    %142 = vector.broadcast %cst_45 : f32 to vector<8x128xf32>
    %143 = arith.select %32, %108, %142 : vector<8x128xi1>, vector<8x128xf32>
    %cst_46 = arith.constant dense<0xFF800000> : vector<8xf32>
    %144 = vector.multi_reduction <maximumf>, %143, %cst_46 [1] : vector<8x128xf32> to vector<8xf32>
    %145 = vector.shape_cast %144 : vector<8xf32> to vector<8x1xf32>
    %146 = vector.shape_cast %145 : vector<8x1xf32> to vector<8x1xf32>
    %147 = vector.broadcast %146 : vector<8x1xf32> to vector<8x128xf32>
    %148 = arith.select %32, %147, %138 : vector<8x128xi1>, vector<8x128xf32>
    %149 = vector.shape_cast %145 : vector<8x1xf32> to vector<8x1xf32>
    %150 = vector.broadcast %149 : vector<8x1xf32> to vector<8x128xf32>
    %151 = arith.select %119, %150, %141 : vector<8x128xi1>, vector<8x128xf32>
    %cst_47 = arith.constant -1.000000e+30 : f32
    %152 = vector.broadcast %cst_47 : f32 to vector<8x128xf32>
    %153 = arith.select %37, %108, %152 : vector<8x128xi1>, vector<8x128xf32>
    %cst_48 = arith.constant dense<0xFF800000> : vector<8xf32>
    %154 = vector.multi_reduction <maximumf>, %153, %cst_48 [1] : vector<8x128xf32> to vector<8xf32>
    %155 = vector.shape_cast %154 : vector<8xf32> to vector<8x1xf32>
    %156 = vector.shape_cast %155 : vector<8x1xf32> to vector<8x1xf32>
    %157 = vector.broadcast %156 : vector<8x1xf32> to vector<8x128xf32>
    %158 = arith.select %37, %157, %148 : vector<8x128xi1>, vector<8x128xf32>
    %159 = vector.shape_cast %155 : vector<8x1xf32> to vector<8x1xf32>
    %160 = vector.broadcast %159 : vector<8x1xf32> to vector<8x128xf32>
    %161 = arith.select %124, %160, %151 : vector<8x128xi1>, vector<8x128xf32>
    %cst_49 = arith.constant -1.000000e+30 : f32
    %162 = vector.broadcast %cst_49 : f32 to vector<8x128xf32>
    %163 = arith.select %42, %108, %162 : vector<8x128xi1>, vector<8x128xf32>
    %cst_50 = arith.constant dense<0xFF800000> : vector<8xf32>
    %164 = vector.multi_reduction <maximumf>, %163, %cst_50 [1] : vector<8x128xf32> to vector<8xf32>
    %165 = vector.shape_cast %164 : vector<8xf32> to vector<8x1xf32>
    %166 = vector.shape_cast %165 : vector<8x1xf32> to vector<8x1xf32>
    %167 = vector.broadcast %166 : vector<8x1xf32> to vector<8x128xf32>
    %168 = arith.select %42, %167, %158 : vector<8x128xi1>, vector<8x128xf32>
    %169 = vector.shape_cast %165 : vector<8x1xf32> to vector<8x1xf32>
    %170 = vector.broadcast %169 : vector<8x1xf32> to vector<8x128xf32>
    %171 = arith.select %129, %170, %161 : vector<8x128xi1>, vector<8x128xf32>
    %172 = arith.subf %108, %168 : vector<8x128xf32>
    %173 = math.exp %172 : vector<8x128xf32>
    %cst_51 = arith.constant dense<0.000000e+00> : vector<8x128xf32>
    %174 = tpu.matmul %173, %109, %cst_51 {dimension_numbers = #tpu.dot_dimension_numbers<[1], [0], [0], [1], [0, 0, 1, 1], [], []>} : vector<8x128xf32>, vector<128x128xf32>, vector<8x128xf32> -> vector<8x128xf32>
    %cst_52 = arith.constant 9.99999991E-38 : f32
    %175 = vector.broadcast %cst_52 : f32 to vector<8x128xf32>
    %176 = arith.maximumf %174, %175 : vector<8x128xf32>
    %177 = math.log %176 : vector<8x128xf32>
    %178 = arith.addf %177, %171 : vector<8x128xf32>
    %c0_53 = arith.constant 0 : index
    %c0_54 = arith.constant 0 : index
    %179 = vector.load %arg8[%c0_53, %c0_54] : memref<128x128xf32, #tpu.memory_space<vmem>>, vector<128x128xf32>
    %cst_55 = arith.constant dense<0.000000e+00> : vector<8x128xf32>
    %180 = tpu.matmul %107, %179, %cst_55 {dimension_numbers = #tpu.dot_dimension_numbers<[1], [0], [0], [1], [0, 0, 1, 1], [], []>} : vector<8x128xf32>, vector<128x128xf32>, vector<8x128xf32> -> vector<8x128xf32>
    %c4_i32_56 = arith.constant 4 : i32
    %181 = vector.broadcast %c4_i32_56 : i32 to vector<8x128xi32>
    %182 = arith.cmpi slt, %22, %181 : vector<8x128xi32>
    %cst_57 = arith.constant 0.000000e+00 : f32
    %183 = vector.broadcast %cst_57 : f32 to vector<8x128xf32>
    %184 = arith.select %182, %178, %183 : vector<8x128xi1>, vector<8x128xf32>
    %cst_58 = arith.constant dense<0.000000e+00> : vector<8xf32>
    %185 = vector.multi_reduction <add>, %184, %cst_58 [1] : vector<8x128xf32> to vector<8xf32>
    %186 = vector.shape_cast %185 : vector<8xf32> to vector<8x1xf32>
    %c4_i32_59 = arith.constant 4 : i32
    %187 = vector.broadcast %c4_i32_59 : i32 to vector<8x128xi32>
    %188 = arith.cmpi eq, %22, %187 : vector<8x128xi32>
    %189 = vector.shape_cast %186 : vector<8x1xf32> to vector<8x1xf32>
    %190 = vector.broadcast %189 : vector<8x1xf32> to vector<8x128xf32>
    %191 = arith.select %188, %190, %180 : vector<8x128xi1>, vector<8x128xf32>
    %c0_60 = arith.constant 0 : index
    %c0_61 = arith.constant 0 : index
    %192 = vector.load %arg10[%c0_60, %c0_61] : memref<8x128xf32, #tpu.memory_space<vmem>>, vector<8x128xf32>
    tpu.vector_store %arg10[%c0_60, %c0_61], %191 {strides = array<i32>} : memref<8x128xf32, #tpu.memory_space<vmem>>, vector<8x128xf32>,
    return
  }
  func.func @transform_0(%arg0: i32) -> (i32, i32) {
    %c0_i32 = arith.constant 0 : i32
    %c0_i32_0 = arith.constant 0 : i32
    return %arg0, %c0_i32 : i32, i32
  }
  func.func @transform_1(%arg0: i32) -> (i32, i32) {
    %c0_i32 = arith.constant 0 : i32
    %c0_i32_0 = arith.constant 0 : i32
    %c0_i32_1 = arith.constant 0 : i32
    return %c0_i32, %c0_i32_0 : i32, i32
  }
  func.func @transform_2(%arg0: i32) -> (i32, i32) {
    %c0_i32 = arith.constant 0 : i32
    %c0_i32_0 = arith.constant 0 : i32
    %c0_i32_1 = arith.constant 0 : i32
    return %c0_i32, %c0_i32_0 : i32, i32
  }
  func.func @transform_3(%arg0: i32) -> (i32, i32) {
    %c0_i32 = arith.constant 0 : i32
    %c0_i32_0 = arith.constant 0 : i32
    %c0_i32_1 = arith.constant 0 : i32
    return %c0_i32, %c0_i32_0 : i32, i32
  }
  func.func @transform_4(%arg0: i32) -> (i32, i32) {
    %c0_i32 = arith.constant 0 : i32
    %c0_i32_0 = arith.constant 0 : i32
    %c0_i32_1 = arith.constant 0 : i32
    return %c0_i32, %c0_i32_0 : i32, i32
  }
  func.func @transform_5(%arg0: i32) -> (i32, i32) {
    %c0_i32 = arith.constant 0 : i32
    %c0_i32_0 = arith.constant 0 : i32
    %c0_i32_1 = arith.constant 0 : i32
    return %c0_i32, %c0_i32_0 : i32, i32
  }
  func.func @transform_6(%arg0: i32) -> (i32, i32) {
    %c0_i32 = arith.constant 0 : i32
    %c0_i32_0 = arith.constant 0 : i32
    %c0_i32_1 = arith.constant 0 : i32
    return %c0_i32, %c0_i32_0 : i32, i32
  }
  func.func @transform_7(%arg0: i32) -> (i32, i32) {
    %c0_i32 = arith.constant 0 : i32
    %c0_i32_0 = arith.constant 0 : i32
    %c0_i32_1 = arith.constant 0 : i32
    return %c0_i32, %c0_i32_0 : i32, i32
  }
  func.func @transform_8(%arg0: i32) -> (i32, i32) {
    %c0_i32 = arith.constant 0 : i32
    %c0_i32_0 = arith.constant 0 : i32
    %c0_i32_1 = arith.constant 0 : i32
    return %c0_i32, %c0_i32_0 : i32, i32
  }
  func.func @transform_9(%arg0: i32) -> (i32, i32) {
    %c0_i32 = arith.constant 0 : i32
    %c0_i32_0 = arith.constant 0 : i32
    return %arg0, %c0_i32 : i32, i32
  }
}

module attributes {stable_mosaic.version = 11 : i64} {
  func.func @kernel(%arg0: i32, %arg1: memref<8x4xf32, #tpu.memory_space<vmem>>, %arg2: memref<1x128xf32, #tpu.memory_space<vmem>>, %arg3: memref<4x128xf32, #tpu.memory_space<vmem>>, %arg4: memref<1x128xf32, #tpu.memory_space<vmem>>, %arg5: memref<128x128xf32, #tpu.memory_space<vmem>>, %arg6: memref<1x128xf32, #tpu.memory_space<vmem>>, %arg7: memref<128x128xf32, #tpu.memory_space<vmem>>, %arg8: memref<128x128xf32, #tpu.memory_space<vmem>>, %arg9: memref<128x128xf32, #tpu.memory_space<vmem>>, %arg10: memref<8x128xf32, #tpu.memory_space<vmem>>) attributes {dimension_semantics = [#tpu.dimension_semantics<parallel>], iteration_bounds = array<i64: 1>, scalar_prefetch = 0 : i64, scratch_operands = 0 : i64, tpu.core_type = #tpu.core_type<tc>, window_params = [{transform_indices = @transform_0, window_bounds = array<i64: 8, 4>}, {pipeline_mode = #tpu.pipeline_mode<synchronous>, transform_indices = @transform_1, window_bounds = array<i64: 1, 128>}, {pipeline_mode = #tpu.pipeline_mode<synchronous>, transform_indices = @transform_2, window_bounds = array<i64: 4, 128>}, {pipeline_mode = #tpu.pipeline_mode<synchronous>, transform_indices = @transform_3, window_bounds = array<i64: 1, 128>}, {pipeline_mode = #tpu.pipeline_mode<synchronous>, transform_indices = @transform_4, window_bounds = array<i64: 128, 128>}, {pipeline_mode = #tpu.pipeline_mode<synchronous>, transform_indices = @transform_5, window_bounds = array<i64: 1, 128>}, {pipeline_mode = #tpu.pipeline_mode<synchronous>, transform_indices = @transform_6, window_bounds = array<i64: 128, 128>}, {pipeline_mode = #tpu.pipeline_mode<synchronous>, transform_indices = @transform_7, window_bounds = array<i64: 128, 128>}, {pipeline_mode = #tpu.pipeline_mode<synchronous>, transform_indices = @transform_8, window_bounds = array<i64: 128, 128>}, {transform_indices = @transform_9, window_bounds = array<i64: 8, 128>}]} {
    %c0 = arith.constant 0 : index
    %c0_0 = arith.constant 0 : index
    %0 = vector.load %arg1[%c0, %c0_0] : memref<8x4xf32, #tpu.memory_space<vmem>>, vector<8x4xf32>
    %c0_1 = arith.constant 0 : index
    %c0_2 = arith.constant 0 : index
    %1 = vector.load %arg2[%c0_1, %c0_2] : memref<1x128xf32, #tpu.memory_space<vmem>>, vector<1x128xf32>
    %2 = vector.shape_cast %1 : vector<1x128xf32> to vector<1x128xf32>
    %3 = vector.broadcast %2 : vector<1x128xf32> to vector<8x128xf32>
    %c0_3 = arith.constant 0 : index
    %c0_4 = arith.constant 0 : index
    %4 = vector.load %arg3[%c0_3, %c0_4] : memref<4x128xf32, #tpu.memory_space<vmem>>, vector<4x128xf32>
    %cst = arith.constant dense<0.000000e+00> : vector<8x128xf32>
    %5 = tpu.matmul %0, %4, %cst {dimension_numbers = #tpu.dot_dimension_numbers<[1], [0], [0], [1], [0, 0, 1, 1], [], []>} : vector<8x4xf32>, vector<4x128xf32>, vector<8x128xf32> -> vector<8x128xf32>
    %c0_5 = arith.constant 0 : index
    %c0_6 = arith.constant 0 : index
    %6 = vector.load %arg4[%c0_5, %c0_6] : memref<1x128xf32, #tpu.memory_space<vmem>>, vector<1x128xf32>
    %7 = vector.broadcast %6 : vector<1x128xf32> to vector<8x128xf32>
    %8 = arith.addf %5, %7 : vector<8x128xf32>
    %9 = math.absf %8 : vector<8x128xf32>
    %cst_7 = arith.constant -2.000000e+00 : f32
    %10 = vector.broadcast %cst_7 : f32 to vector<8x128xf32>
    %11 = arith.mulf %10, %9 : vector<8x128xf32>
    %12 = math.exp %11 : vector<8x128xf32>
    %cst_8 = arith.constant 0.693147182 : f32
    %13 = vector.broadcast %cst_8 : f32 to vector<8x128xf32>
    %14 = arith.subf %13, %9 : vector<8x128xf32>
    %15 = math.log1p %12 : vector<8x128xf32>
    %16 = arith.subf %14, %15 : vector<8x128xf32>
    %cst_9 = arith.constant 2.000000e+00 : f32
    %17 = vector.broadcast %cst_9 : f32 to vector<8x128xf32>
    %18 = arith.mulf %17, %16 : vector<8x128xf32>
    %19 = math.tanh %8 : vector<8x128xf32>
    %20 = arith.addf %3, %18 : vector<8x128xf32>
    %c0_10 = arith.constant 0 : index
    %c0_11 = arith.constant 0 : index
    %21 = vector.load %arg7[%c0_10, %c0_11] : memref<128x128xf32, #tpu.memory_space<vmem>>, vector<128x128xf32>
    %22 = tpu.iota {dimensions = array<i32: 1>} : vector<8x128xi32>
    %c0_i32 = arith.constant 0 : i32
    %23 = vector.broadcast %c0_i32 : i32 to vector<8x128xi32>
    %24 = arith.cmpi sge, %22, %23 : vector<8x128xi32>
    %c8_i32 = arith.constant 8 : i32
    %25 = vector.broadcast %c8_i32 : i32 to vector<8x128xi32>
    %26 = arith.cmpi slt, %22, %25 : vector<8x128xi32>
    %27 = arith.andi %24, %26 : vector<8x128xi1>
    %c8_i32_12 = arith.constant 8 : i32
    %28 = vector.broadcast %c8_i32_12 : i32 to vector<8x128xi32>
    %29 = arith.cmpi sge, %22, %28 : vector<8x128xi32>
    %c16_i32 = arith.constant 16 : i32
    %30 = vector.broadcast %c16_i32 : i32 to vector<8x128xi32>
    %31 = arith.cmpi slt, %22, %30 : vector<8x128xi32>
    %32 = arith.andi %29, %31 : vector<8x128xi1>
    %c16_i32_13 = arith.constant 16 : i32
    %33 = vector.broadcast %c16_i32_13 : i32 to vector<8x128xi32>
    %34 = arith.cmpi sge, %22, %33 : vector<8x128xi32>
    %c24_i32 = arith.constant 24 : i32
    %35 = vector.broadcast %c24_i32 : i32 to vector<8x128xi32>
    %36 = arith.cmpi slt, %22, %35 : vector<8x128xi32>
    %37 = arith.andi %34, %36 : vector<8x128xi1>
    %c24_i32_14 = arith.constant 24 : i32
    %38 = vector.broadcast %c24_i32_14 : i32 to vector<8x128xi32>
    %39 = arith.cmpi sge, %22, %38 : vector<8x128xi32>
    %c32_i32 = arith.constant 32 : i32
    %40 = vector.broadcast %c32_i32 : i32 to vector<8x128xi32>
    %41 = arith.cmpi slt, %22, %40 : vector<8x128xi32>
    %42 = arith.andi %39, %41 : vector<8x128xi1>
    %cst_15 = arith.constant 0.000000e+00 : f32
    %43 = vector.broadcast %cst_15 : f32 to vector<8x128xf32>
    %cst_16 = arith.constant 0.000000e+00 : f32
    %44 = vector.broadcast %cst_16 : f32 to vector<8x128xf32>
    %cst_17 = arith.constant -1.000000e+30 : f32
    %45 = vector.broadcast %cst_17 : f32 to vector<8x128xf32>
    %46 = arith.select %27, %20, %45 : vector<8x128xi1>, vector<8x128xf32>
    %cst_18 = arith.constant dense<0xFF800000> : vector<8xf32>
    %47 = vector.multi_reduction <maximumf>, %46, %cst_18 [1] : vector<8x128xf32> to vector<8xf32>
    %48 = vector.shape_cast %47 : vector<8xf32> to vector<8x1xf32>
    %49 = vector.shape_cast %48 : vector<8x1xf32> to vector<8x1xf32>
    %50 = vector.broadcast %49 : vector<8x1xf32> to vector<8x128xf32>
    %51 = arith.select %27, %50, %43 : vector<8x128xi1>, vector<8x128xf32>
    %52 = vector.shape_cast %48 : vector<8x1xf32> to vector<8x1xf32>
    %53 = vector.broadcast %52 : vector<8x1xf32> to vector<8x128xf32>
    %54 = arith.select %27, %53, %44 : vector<8x128xi1>, vector<8x128xf32>
    %cst_19 = arith.constant -1.000000e+30 : f32
    %55 = vector.broadcast %cst_19 : f32 to vector<8x128xf32>
    %56 = arith.select %32, %20, %55 : vector<8x128xi1>, vector<8x128xf32>
    %cst_20 = arith.constant dense<0xFF800000> : vector<8xf32>
    %57 = vector.multi_reduction <maximumf>, %56, %cst_20 [1] : vector<8x128xf32> to vector<8xf32>
    %58 = vector.shape_cast %57 : vector<8xf32> to vector<8x1xf32>
    %59 = vector.shape_cast %58 : vector<8x1xf32> to vector<8x1xf32>
    %60 = vector.broadcast %59 : vector<8x1xf32> to vector<8x128xf32>
    %61 = arith.select %32, %60, %51 : vector<8x128xi1>, vector<8x128xf32>
    %62 = vector.shape_cast %58 : vector<8x1xf32> to vector<8x1xf32>
    %63 = vector.broadcast %62 : vector<8x1xf32> to vector<8x128xf32>
    %64 = arith.select %32, %63, %54 : vector<8x128xi1>, vector<8x128xf32>
    %cst_21 = arith.constant -1.000000e+30 : f32
    %65 = vector.broadcast %cst_21 : f32 to vector<8x128xf32>
    %66 = arith.select %37, %20, %65 : vector<8x128xi1>, vector<8x128xf32>
    %cst_22 = arith.constant dense<0xFF800000> : vector<8xf32>
    %67 = vector.multi_reduction <maximumf>, %66, %cst_22 [1] : vector<8x128xf32> to vector<8xf32>
    %68 = vector.shape_cast %67 : vector<8xf32> to vector<8x1xf32>
    %69 = vector.shape_cast %68 : vector<8x1xf32> to vector<8x1xf32>
    %70 = vector.broadcast %69 : vector<8x1xf32> to vector<8x128xf32>
    %71 = arith.select %37, %70, %61 : vector<8x128xi1>, vector<8x128xf32>
    %72 = vector.shape_cast %68 : vector<8x1xf32> to vector<8x1xf32>
    %73 = vector.broadcast %72 : vector<8x1xf32> to vector<8x128xf32>
    %74 = arith.select %37, %73, %64 : vector<8x128xi1>, vector<8x128xf32>
    %cst_23 = arith.constant -1.000000e+30 : f32
    %75 = vector.broadcast %cst_23 : f32 to vector<8x128xf32>
    %76 = arith.select %42, %20, %75 : vector<8x128xi1>, vector<8x128xf32>
    %cst_24 = arith.constant dense<0xFF800000> : vector<8xf32>
    %77 = vector.multi_reduction <maximumf>, %76, %cst_24 [1] : vector<8x128xf32> to vector<8xf32>
    %78 = vector.shape_cast %77 : vector<8xf32> to vector<8x1xf32>
    %79 = vector.shape_cast %78 : vector<8x1xf32> to vector<8x1xf32>
    %80 = vector.broadcast %79 : vector<8x1xf32> to vector<8x128xf32>
    %81 = arith.select %42, %80, %71 : vector<8x128xi1>, vector<8x128xf32>
    %82 = vector.shape_cast %78 : vector<8x1xf32> to vector<8x1xf32>
    %83 = vector.broadcast %82 : vector<8x1xf32> to vector<8x128xf32>
    %84 = arith.select %42, %83, %74 : vector<8x128xi1>, vector<8x128xf32>
    %85 = arith.subf %20, %81 : vector<8x128xf32>
    %86 = math.exp %85 : vector<8x128xf32>
    %cst_25 = arith.constant dense<0.000000e+00> : vector<8x128xf32>
    %87 = tpu.matmul %86, %21, %cst_25 {dimension_numbers = #tpu.dot_dimension_numbers<[1], [0], [0], [1], [0, 0, 1, 1], [], []>} : vector<8x128xf32>, vector<128x128xf32>, vector<8x128xf32> -> vector<8x128xf32>
    %cst_26 = arith.constant 9.99999991E-38 : f32
    %88 = vector.broadcast %cst_26 : f32 to vector<8x128xf32>
    %89 = arith.maximumf %87, %88 : vector<8x128xf32>
    %90 = math.log %89 : vector<8x128xf32>
    %91 = arith.addf %90, %84 : vector<8x128xf32>
    %c0_27 = arith.constant 0 : index
    %c0_28 = arith.constant 0 : index
    %92 = vector.load %arg5[%c0_27, %c0_28] : memref<128x128xf32, #tpu.memory_space<vmem>>, vector<128x128xf32>
    %cst_29 = arith.constant dense<0.000000e+00> : vector<8x128xf32>
    %93 = tpu.matmul %19, %92, %cst_29 {dimension_numbers = #tpu.dot_dimension_numbers<[1], [0], [0], [1], [0, 0, 1, 1], [], []>} : vector<8x128xf32>, vector<128x128xf32>, vector<8x128xf32> -> vector<8x128xf32>
    %c0_30 = arith.constant 0 : index
    %c0_31 = arith.constant 0 : index
    %94 = vector.load %arg6[%c0_30, %c0_31] : memref<1x128xf32, #tpu.memory_space<vmem>>, vector<1x128xf32>
    %95 = vector.broadcast %94 : vector<1x128xf32> to vector<8x128xf32>
    %96 = arith.addf %93, %95 : vector<8x128xf32>
    %97 = math.absf %96 : vector<8x128xf32>
    %cst_32 = arith.constant -2.000000e+00 : f32
    %98 = vector.broadcast %cst_32 : f32 to vector<8x128xf32>
    %99 = arith.mulf %98, %97 : vector<8x128xf32>
    %100 = math.exp %99 : vector<8x128xf32>
    %cst_33 = arith.constant 0.693147182 : f32
    %101 = vector.broadcast %cst_33 : f32 to vector<8x128xf32>
    %102 = arith.subf %101, %97 : vector<8x128xf32>
    %103 = math.log1p %100 : vector<8x128xf32>
    %104 = arith.subf %102, %103 : vector<8x128xf32>
    %cst_34 = arith.constant 2.000000e+00 : f32
    %105 = vector.broadcast %cst_34 : f32 to vector<8x128xf32>
    %106 = arith.mulf %105, %104 : vector<8x128xf32>
    %107 = math.tanh %96 : vector<8x128xf32>
    %108 = arith.addf %91, %106 : vector<8x128xf32>
    %c0_35 = arith.constant 0 : index
    %c0_36 = arith.constant 0 : index
    %109 = vector.load %arg9[%c0_35, %c0_36] : memref<128x128xf32, #tpu.memory_space<vmem>>, vector<128x128xf32>
    %c0_i32_37 = arith.constant 0 : i32
    %110 = vector.broadcast %c0_i32_37 : i32 to vector<8x128xi32>
    %111 = arith.cmpi sge, %22, %110 : vector<8x128xi32>
    %c1_i32 = arith.constant 1 : i32
    %112 = vector.broadcast %c1_i32 : i32 to vector<8x128xi32>
    %113 = arith.cmpi slt, %22, %112 : vector<8x128xi32>
    %114 = arith.andi %111, %113 : vector<8x128xi1>
    %c1_i32_38 = arith.constant 1 : i32
    %115 = vector.broadcast %c1_i32_38 : i32 to vector<8x128xi32>
    %116 = arith.cmpi sge, %22, %115 : vector<8x128xi32>
    %c2_i32 = arith.constant 2 : i32
    %117 = vector.broadcast %c2_i32 : i32 to vector<8x128xi32>
    %118 = arith.cmpi slt, %22, %117 : vector<8x128xi32>
    %119 = arith.andi %116, %118 : vector<8x128xi1>
    %c2_i32_39 = arith.constant 2 : i32
    %120 = vector.broadcast %c2_i32_39 : i32 to vector<8x128xi32>
    %121 = arith.cmpi sge, %22, %120 : vector<8x128xi32>
    %c3_i32 = arith.constant 3 : i32
    %122 = vector.broadcast %c3_i32 : i32 to vector<8x128xi32>
    %123 = arith.cmpi slt, %22, %122 : vector<8x128xi32>
    %124 = arith.andi %121, %123 : vector<8x128xi1>
    %c3_i32_40 = arith.constant 3 : i32
    %125 = vector.broadcast %c3_i32_40 : i32 to vector<8x128xi32>
    %126 = arith.cmpi sge, %22, %125 : vector<8x128xi32>
    %c4_i32 = arith.constant 4 : i32
    %127 = vector.broadcast %c4_i32 : i32 to vector<8x128xi32>
    %128 = arith.cmpi slt, %22, %127 : vector<8x128xi32>
    %129 = arith.andi %126, %128 : vector<8x128xi1>
    %cst_41 = arith.constant 0.000000e+00 : f32
    %130 = vector.broadcast %cst_41 : f32 to vector<8x128xf32>
    %cst_42 = arith.constant 0.000000e+00 : f32
    %131 = vector.broadcast %cst_42 : f32 to vector<8x128xf32>
    %cst_43 = arith.constant -1.000000e+30 : f32
    %132 = vector.broadcast %cst_43 : f32 to vector<8x128xf32>
    %133 = arith.select %27, %108, %132 : vector<8x128xi1>, vector<8x128xf32>
    %cst_44 = arith.constant dense<0xFF800000> : vector<8xf32>
    %134 = vector.multi_reduction <maximumf>, %133, %cst_44 [1] : vector<8x128xf32> to vector<8xf32>
    %135 = vector.shape_cast %134 : vector<8xf32> to vector<8x1xf32>
    %136 = vector.shape_cast %135 : vector<8x1xf32> to vector<8x1xf32>
    %137 = vector.broadcast %136 : vector<8x1xf32> to vector<8x128xf32>
    %138 = arith.select %27, %137, %130 : vector<8x128xi1>, vector<8x128xf32>
    %139 = vector.shape_cast %135 : vector<8x1xf32> to vector<8x1xf32>
    %140 = vector.broadcast %139 : vector<8x1xf32> to vector<8x128xf32>
    %141 = arith.select %114, %140, %131 : vector<8x128xi1>, vector<8x128xf32>
    %cst_45 = arith.constant -1.000000e+30 : f32
    %142 = vector.broadcast %cst_45 : f32 to vector<8x128xf32>
    %143 = arith.select %32, %108, %142 : vector<8x128xi1>, vector<8x128xf32>
    %cst_46 = arith.constant dense<0xFF800000> : vector<8xf32>
    %144 = vector.multi_reduction <maximumf>, %143, %cst_46 [1] : vector<8x128xf32> to vector<8xf32>
    %145 = vector.shape_cast %144 : vector<8xf32> to vector<8x1xf32>
    %146 = vector.shape_cast %145 : vector<8x1xf32> to vector<8x1xf32>
    %147 = vector.broadcast %146 : vector<8x1xf32> to vector<8x128xf32>
    %148 = arith.select %32, %147, %138 : vector<8x128xi1>, vector<8x128xf32>
    %149 = vector.shape_cast %145 : vector<8x1xf32> to vector<8x1xf32>
    %150 = vector.broadcast %149 : vector<8x1xf32> to vector<8x128xf32>
    %151 = arith.select %119, %150, %141 : vector<8x128xi1>, vector<8x128xf32>
    %cst_47 = arith.constant -1.000000e+30 : f32
    %152 = vector.broadcast %cst_47 : f32 to vector<8x128xf32>
    %153 = arith.select %37, %108, %152 : vector<8x128xi1>, vector<8x128xf32>
    %cst_48 = arith.constant dense<0xFF800000> : vector<8xf32>
    %154 = vector.multi_reduction <maximumf>, %153, %cst_48 [1] : vector<8x128xf32> to vector<8xf32>
    %155 = vector.shape_cast %154 : vector<8xf32> to vector<8x1xf32>
    %156 = vector.shape_cast %155 : vector<8x1xf32> to vector<8x1xf32>
    %157 = vector.broadcast %156 : vector<8x1xf32> to vector<8x128xf32>
    %158 = arith.select %37, %157, %148 : vector<8x128xi1>, vector<8x128xf32>
    %159 = vector.shape_cast %155 : vector<8x1xf32> to vector<8x1xf32>
    %160 = vector.broadcast %159 : vector<8x1xf32> to vector<8x128xf32>
    %161 = arith.select %124, %160, %151 : vector<8x128xi1>, vector<8x128xf32>
    %cst_49 = arith.constant -1.000000e+30 : f32
    %162 = vector.broadcast %cst_49 : f32 to vector<8x128xf32>
    %163 = arith.select %42, %108, %162 : vector<8x128xi1>, vector<8x128xf32>
    %cst_50 = arith.constant dense<0xFF800000> : vector<8xf32>
    %164 = vector.multi_reduction <maximumf>, %163, %cst_50 [1] : vector<8x128xf32> to vector<8xf32>
    %165 = vector.shape_cast %164 : vector<8xf32> to vector<8x1xf32>
    %166 = vector.shape_cast %165 : vector<8x1xf32> to vector<8x1xf32>
    %167 = vector.broadcast %166 : vector<8x1xf32> to vector<8x128xf32>
    %168 = arith.select %42, %167, %158 : vector<8x128xi1>, vector<8x128xf32>
    %169 = vector.shape_cast %165 : vector<8x1xf32> to vector<8x1xf32>
    %170 = vector.broadcast %169 : vector<8x1xf32> to vector<8x128xf32>
    %171 = arith.select %129, %170, %161 : vector<8x128xi1>, vector<8x128xf32>
    %172 = arith.subf %108, %168 : vector<8x128xf32>
    %173 = math.exp %172 : vector<8x128xf32>
    %cst_51 = arith.constant dense<0.000000e+00> : vector<8x128xf32>
    %174 = tpu.matmul %173, %109, %cst_51 {dimension_numbers = #tpu.dot_dimension_numbers<[1], [0], [0], [1], [0, 0, 1, 1], [], []>} : vector<8x128xf32>, vector<128x128xf32>, vector<8x128xf32> -> vector<8x128xf32>
    %cst_52 = arith.constant 9.99999991E-38 : f32
    %175 = vector.broadcast %cst_52 : f32 to vector<8x128xf32>
    %176 = arith.maximumf %174, %175 : vector<8x128xf32>
    %177 = math.log %176 : vector<8x128xf32>
    %178 = arith.addf %177, %171 : vector<8x128xf32>
    %c0_53 = arith.constant 0 : index
    %c0_54 = arith.constant 0 : index
    %179 = vector.load %arg8[%c0_53, %c0_54] : memref<128x128xf32, #tpu.memory_space<vmem>>, vector<128x128xf32>
    %cst_55 = arith.constant dense<0.000000e+00> : vector<8x128xf32>
    %180 = tpu.matmul %107, %179, %cst_55 {dimension_numbers = #tpu.dot_dimension_numbers<[1], [0], [0], [1], [0, 0, 1, 1], [], []>} : vector<8x128xf32>, vector<128x128xf32>, vector<8x128xf32> -> vector<8x128xf32>
    %c4_i32_56 = arith.constant 4 : i32
    %181 = vector.broadcast %c4_i32_56 : i32 to vector<8x128xi32>
    %182 = arith.cmpi slt, %22, %181 : vector<8x128xi32>
    %cst_57 = arith.constant 0.000000e+00 : f32
    %183 = vector.broadcast %cst_57 : f32 to vector<8x128xf32>
    %184 = arith.select %182, %178, %183 : vector<8x128xi1>, vector<8x128xf32>
    %cst_58 = arith.constant dense<0.000000e+00> : vector<8xf32>
    %185 = vector.multi_reduction <add>, %184, %cst_58 [1] : vector<8x128xf32> to vector<8xf32>
    %186 = vector.shape_cast %185 : vector<8xf32> to vector<8x1xf32>
    %c4_i32_59 = arith.constant 4 : i32
    %187 = vector.broadcast %c4_i32_59 : i32 to vector<8x128xi32>
    %188 = arith.cmpi eq, %22, %187 : vector<8x128xi32>
    %189 = vector.shape_cast %186 : vector<8x1xf32> to vector<8x1xf32>
    %190 = vector.broadcast %189 : vector<8x1xf32> to vector<8x128xf32>
    %191 = arith.select %188, %190, %180 : vector<8x128xi1>, vector<8x128xf32>
    %c0_60 = arith.constant 0 : index
    %c0_61 = arith.constant 0 : index
    %192 = vector.load %arg10[%c0_60, %c0_61] : memref<8x128xf32, #tpu.memory_space<vmem>>, vector<8x128xf32>
    tpu.vector_store %arg10[%c0_60, %c0_61], %191 {strides = array<i32>} : memref<8x128xf32, #tpu.memory_space<vmem>>, vector<8x128xf32>,
    return
  }
  func.func @transform_0(%arg0: i32) -> (i32, i32) {
    %c0_i32 = arith.constant 0 : i32
    %c0_i32_0 = arith.constant 0 : i32
    return %arg0, %c0_i32 : i32, i32
  }
  func.func @transform_1(%arg0: i32) -> (i32, i32) {
    %c0_i32 = arith.constant 0 : i32
    %c0_i32_0 = arith.constant 0 : i32
    %c0_i32_1 = arith.constant 0 : i32
    return %c0_i32, %c0_i32_0 : i32, i32
  }
  func.func @transform_2(%arg0: i32) -> (i32, i32) {
    %c0_i32 = arith.constant 0 : i32
    %c0_i32_0 = arith.constant 0 : i32
    %c0_i32_1 = arith.constant 0 : i32
    return %c0_i32, %c0_i32_0 : i32, i32
  }
  func.func @transform_3(%arg0: i32) -> (i32, i32) {
    %c0_i32 = arith.constant 0 : i32
    %c0_i32_0 = arith.constant 0 : i32
    %c0_i32_1 = arith.constant 0 : i32
    return %c0_i32, %c0_i32_0 : i32, i32
  }
  func.func @transform_4(%arg0: i32) -> (i32, i32) {
    %c0_i32 = arith.constant 0 : i32
    %c0_i32_0 = arith.constant 0 : i32
    %c0_i32_1 = arith.constant 0 : i32
    return %c0_i32, %c0_i32_0 : i32, i32
  }
  func.func @transform_5(%arg0: i32) -> (i32, i32) {
    %c0_i32 = arith.constant 0 : i32
    %c0_i32_0 = arith.constant 0 : i32
    %c0_i32_1 = arith.constant 0 : i32
    return %c0_i32, %c0_i32_0 : i32, i32
  }
  func.func @transform_6(%arg0: i32) -> (i32, i32) {
    %c0_i32 = arith.constant 0 : i32
    %c0_i32_0 = arith.constant 0 : i32
    %c0_i32_1 = arith.constant 0 : i32
    return %c0_i32, %c0_i32_0 : i32, i32
  }
  func.func @transform_7(%arg0: i32) -> (i32, i32) {
    %c0_i32 = arith.constant 0 : i32
    %c0_i32_0 = arith.constant 0 : i32
    %c0_i32_1 = arith.constant 0 : i32
    return %c0_i32, %c0_i32_0 : i32, i32
  }
  func.func @transform_8(%arg0: i32) -> (i32, i32) {
    %c0_i32 = arith.constant 0 : i32
    %c0_i32_0 = arith.constant 0 : i32
    %c0_i32_1 = arith.constant 0 : i32
    return %c0_i32, %c0_i32_0 : i32, i32
  }
  func.func @transform_9(%arg0: i32) -> (i32, i32) {
    %c0_i32 = arith.constant 0 : i32
    %c0_i32_0 = arith.constant 0 : i32
    return %arg0, %c0_i32 : i32, i32
  }
}

</mosaic_0001>

<llo_original>
// kernel: tpu_custom_call.1
$region0: #{tpu_custom_call.1}
  #allocation0 [shape = 'u32[]', space=smem, size = 0x4, offset = 0x4, fixed_abs, tag = 'smem constant byte address 0x4 - core index']
  #allocation1 [shape = 'u32[144,128]{1,0:T(1,128)}', space=vmem, size = 0x12000, scoped, tag = 'internal scratch']
  %s0 = inlined_call_operand.vmem [shape: f32[8,4], index: 0, kind: input, shape index: {}]
  %s1 = inlined_call_operand.vmem [shape: f32[1,128], index: 1, kind: input, shape index: {}]
  %s2 = inlined_call_operand.vmem [shape: f32[4,128], index: 2, kind: input, shape index: {}]
  %s3 = inlined_call_operand.vmem [shape: f32[1,128], index: 3, kind: input, shape index: {}]
  %s4 = inlined_call_operand.hbm [shape: f32[128,128], index: 4, kind: input, shape index: {}]
  %s5 = inlined_call_operand.vmem [shape: f32[1,128], index: 5, kind: input, shape index: {}]
  %s6 = inlined_call_operand.hbm [shape: f32[128,128], index: 6, kind: input, shape index: {}]
  %s7 = inlined_call_operand.hbm [shape: f32[128,128], index: 7, kind: input, shape index: {}]
  %s8 = inlined_call_operand.hbm [shape: f32[128,128], index: 8, kind: input, shape index: {}]
  %s9 = inlined_call_operand.hbm [shape: f32[8,128], index: 9, kind: output, shape index: {}]
  %s10 = sld [smem:[#allocation0]]
  $region62: #{tpu_custom_call.1} parent=0
    _
  %s12 = ssub.s32 1, %s10
  %s13 = scalar_select 0, %s12, %s10
  $region1: #{tpu_custom_call.1} parent=0
    #allocation2 [shape = 'u8[65536]{0}', space=vmem, size = 0x10000, scoped, tag = 'input window, operand 4, single buffered']
    #allocation3 [shape = 's32[1]{0}', space=sflag, size = 0x4, scoped, tag = 'scoped memory for tpu_custom_call.1']
    #allocation4 [shape = 's32[1]{0}', space=sflag, size = 0x4, scoped, tag = 'scoped memory for tpu_custom_call.1']
    #allocation5 [shape = 'u8[65536]{0}', space=vmem, size = 0x10000, scoped, tag = 'input window, operand 6, single buffered']
    #allocation6 [shape = 's32[1]{0}', space=sflag, size = 0x4, scoped, tag = 'scoped memory for tpu_custom_call.1']
    #allocation7 [shape = 'u8[65536]{0}', space=vmem, size = 0x10000, scoped, tag = 'input window, operand 7, single buffered']
    #allocation8 [shape = 'u8[65536]{0}', space=vmem, size = 0x10000, scoped, tag = 'input window, operand 8, single buffered']
    #allocation9 [shape = 's32[1]{0}', space=sflag, size = 0x4, scoped, tag = 'scoped memory for tpu_custom_call.1']
    #allocation10 [shape = 'u8[4096]{0}', space=vmem, size = 0x1000, scoped, tag = 'output window, operand 0, single buffered']
    %14 = vsyncpa [#allocation3], 0
    %15 = vsyncpa [#allocation6], 0
    %16 = vsyncpa [#allocation9], 0
    %17 = vsyncpa [#allocation4], 0
    // Predicated region
    $region2: #{tpu_custom_call.1} parent=1 // pred_check
      _
    $region3: #{tpu_custom_call.1} parent=1 // pred_check_branch
      %19 = sbr.rel (0) target = $region5
    $region4: #{tpu_custom_call.1} parent=1 // pred_region
      _
    $region5: #{tpu_custom_call.1} parent=1 // pred_fallthru
      _
    // Predicated region
    $region6: #{tpu_custom_call.1} parent=1 // pred_check
      _
    $region7: #{tpu_custom_call.1} parent=1 // pred_check_branch
      %21 = sbr.rel (0) target = $region9
    $region8: #{tpu_custom_call.1} parent=1 // pred_region
      _
    $region9: #{tpu_custom_call.1} parent=1 // pred_fallthru
      _
    // Predicated region
    $region10: #{tpu_custom_call.1} parent=1 // pred_check
      _
    $region11: #{tpu_custom_call.1} parent=1 // pred_check_branch
      %23 = sbr.rel (0) target = $region13
    $region12: #{tpu_custom_call.1} parent=1 // pred_region
      _
    $region13: #{tpu_custom_call.1} parent=1 // pred_fallthru
      _
    // Predicated region
    $region14: #{tpu_custom_call.1} parent=1 // pred_check
      _
    $region15: #{tpu_custom_call.1} parent=1 // pred_check_branch
      %25 = sbr.rel (0) target = $region17
    $region16: #{tpu_custom_call.1} parent=1 // pred_region
      _
    $region17: #{tpu_custom_call.1} parent=1 // pred_fallthru
      _
    // Predicated region
    $region18: #{tpu_custom_call.1} parent=1 // pred_check
      _
    $region19: #{tpu_custom_call.1} parent=1 // pred_check_branch
      %27 = sbr.rel (0) target = $region21
    $region20: #{tpu_custom_call.1} parent=1 // pred_region
      %s29 = ssub.s32 2048, 2048
      %30 = vsyncadd [#allocation3], %s29
      %s31 = sshll.u32 [#allocation2], 4
      %s32 = int_to_ptr.vmem [resolvable:$true] %s31
      %37 = dma.hbm_to_vmem [thread:$0]  %s4, 2048, %s32, [#allocation3], 128, 128, 8
    $region21: #{tpu_custom_call.1} parent=1 // pred_fallthru
      _
    // Predicated region
    $region22: #{tpu_custom_call.1} parent=1 // pred_check
      _
    $region23: #{tpu_custom_call.1} parent=1 // pred_check_branch
      %39 = sbr.rel (0) target = $region25
    $region24: #{tpu_custom_call.1} parent=1 // pred_region
      _
    $region25: #{tpu_custom_call.1} parent=1 // pred_fallthru
      _
    // Predicated region
    $region26: #{tpu_custom_call.1} parent=1 // pred_check
      _
    $region27: #{tpu_custom_call.1} parent=1 // pred_check_branch
      %41 = sbr.rel (0) target = $region29
    $region28: #{tpu_custom_call.1} parent=1 // pred_region
      %s43 = ssub.s32 2048, 2048
      %44 = vsyncadd [#allocation6], %s43
      %s45 = sshll.u32 [#allocation5], 4
      %s46 = int_to_ptr.vmem [resolvable:$true] %s45
      %51 = dma.hbm_to_vmem [thread:$0]  %s6, 2048, %s46, [#allocation6], 128, 128, 8
    $region29: #{tpu_custom_call.1} parent=1 // pred_fallthru
      _
    // Predicated region
    $region30: #{tpu_custom_call.1} parent=1 // pred_check
      _
    $region31: #{tpu_custom_call.1} parent=1 // pred_check_branch
      %53 = sbr.rel (0) target = $region33
    $region32: #{tpu_custom_call.1} parent=1 // pred_region
      %s55 = ssub.s32 2048, 2048
      %56 = vsyncadd [#allocation6], %s55
      %s57 = sshll.u32 [#allocation7], 4
      %s58 = int_to_ptr.vmem [resolvable:$true] %s57
      %63 = dma.hbm_to_vmem [thread:$0]  %s7, 2048, %s58, [#allocation6], 128, 128, 8
    $region33: #{tpu_custom_call.1} parent=1 // pred_fallthru
      _
    // Predicated region
    $region34: #{tpu_custom_call.1} parent=1 // pred_check
      _
    $region35: #{tpu_custom_call.1} parent=1 // pred_check_branch
      %65 = sbr.rel (0) target = $region37
    $region36: #{tpu_custom_call.1} parent=1 // pred_region
      %s67 = ssub.s32 2048, 2048
      %68 = vsyncadd [#allocation9], %s67
      %s69 = sshll.u32 [#allocation8], 4
      %s70 = int_to_ptr.vmem [resolvable:$true] %s69
      %75 = dma.hbm_to_vmem [thread:$0]  %s8, 2048, %s70, [#allocation9], 128, 128, 8
    $region37: #{tpu_custom_call.1} parent=1 // pred_fallthru
      _
    // Predicated region
    $region38: #{tpu_custom_call.1} parent=1 // pred_check
      _
    $region39: #{tpu_custom_call.1} parent=1 // pred_check_branch
      %77 = sbr.rel (0) target = $region41
    $region40: #{tpu_custom_call.1} parent=1 // pred_region
      %78 = dma.done [#allocation3], 2048
    $region41: #{tpu_custom_call.1} parent=1 // pred_fallthru
      _
    // Predicated region
    $region42: #{tpu_custom_call.1} parent=1 // pred_check
      _
    $region43: #{tpu_custom_call.1} parent=1 // pred_check_branch
      %80 = sbr.rel (0) target = $region45
    $region44: #{tpu_custom_call.1} parent=1 // pred_region
      %81 = dma.done [#allocation6], 2048
    $region45: #{tpu_custom_call.1} parent=1 // pred_fallthru
      _
    // Predicated region
    $region46: #{tpu_custom_call.1} parent=1 // pred_check
      _
    $region47: #{tpu_custom_call.1} parent=1 // pred_check_branch
      %83 = sbr.rel (0) target = $region49
    $region48: #{tpu_custom_call.1} parent=1 // pred_region
      %84 = dma.done [#allocation6], 2048
    $region49: #{tpu_custom_call.1} parent=1 // pred_fallthru
      _
    // Predicated region
    $region50: #{tpu_custom_call.1} parent=1 // pred_check
      _
    $region51: #{tpu_custom_call.1} parent=1 // pred_check_branch
      %86 = sbr.rel (0) target = $region53
    $region52: #{tpu_custom_call.1} parent=1 // pred_region
      %87 = dma.done [#allocation9], 2048
    $region53: #{tpu_custom_call.1} parent=1 // pred_fallthru
      _
    %v88 = vld [vmem:[%s0] sm:$0xff]
    %v89 = vld [vmem:[%s1] sm:$0x1]
    %v91 = vlaneseq
    %v92 = vshrl.u32 %v91, 7
    %v93 = vsub.s32 0, %v92
    %v94 = vrot.slane %v89, %v93
    %v96 = vld [vmem:[%s2] sm:$0xf]
    %v97 = vld [vmem:[%s3] sm:$0x1]
    %v99 = vlaneseq
    %v100 = vshrl.u32 %v99, 7
    %v101 = vsub.s32 0, %v100
    %v102 = vrot.slane %v97, %v101
    %vm104 = vcmask 31744
    %v106 = vsel %vm104, %v88, 0
    %vm108 = vcmask 1043456
    %v110 = vsel %vm108, %v96, 0
    %112 = vmatprep.subr.mxu0 0.0
    %113 = vmatpush1.msra.mxu0 0.0
    %114 = vmatprep.subr.mxu0 0.0
    %115 = vmatpush1.msra.mxu0 0.0
    %116 = vmatprep.subr.mxu0 0.0
    %117 = vmatpush1.msra.mxu0 0.0
    %118 = vmatprep.subr.mxu0 0.0
    %119 = vmatpush1.msra.mxu0 0.0
    %120 = vmatprep.subr.mxu0 0.0
    %121 = vmatpush1.msra.mxu0 0.0
    %122 = vmatprep.subr.mxu0 0.0
    %123 = vmatpush1.msra.mxu0 0.0
    %124 = vmatprep.subr.mxu0 0.0
    %125 = vmatpush1.msra.mxu0 0.0
    %126 = vmatprep.subr.mxu0 0.0
    %127 = vmatpush1.msra.mxu0 0.0
    %128 = vmatprep.subr.mxu0 0.0
    %129 = vmatpush1.msra.mxu0 0.0
    %130 = vmatprep.subr.mxu0 0.0
    %131 = vmatpush1.msra.mxu0 0.0
    %132 = vmatprep.subr.mxu0 0.0
    %133 = vmatpush1.msra.mxu0 0.0
    %134 = vmatprep.subr.mxu0 0.0
    %135 = vmatpush1.msra.mxu0 0.0
    %136 = vmatprep.subr.mxu0 0.0
    %137 = vmatpush1.msra.mxu0 0.0
    %138 = vmatprep.subr.mxu0 0.0
    %139 = vmatpush1.msra.mxu0 0.0
    %140 = vmatprep.subr.mxu0 0.0
    %141 = vmatpush1.msra.mxu0 0.0
    %142 = vmatprep.subr.mxu0 0.0
    %143 = vmatpush1.msra.mxu0 %v110
    %144 = vmatprep.subr.mxu0 0.0
    %145 = vmatpush2.msra.mxu0 0.0
    %146 = vmatprep.subr.mxu0 0.0
    %147 = vmatpush2.msra.mxu0 0.0
    %148 = vmatprep.subr.mxu0 0.0
    %149 = vmatpush2.msra.mxu0 0.0
    %150 = vmatprep.subr.mxu0 0.0
    %151 = vmatpush2.msra.mxu0 0.0
    %152 = vmatprep.subr.mxu0 0.0
    %153 = vmatpush2.msra.mxu0 0.0
    %154 = vmatprep.subr.mxu0 0.0
    %155 = vmatpush2.msra.mxu0 0.0
    %156 = vmatprep.subr.mxu0 0.0
    %157 = vmatpush2.msra.mxu0 0.0
    %158 = vmatprep.subr.mxu0 0.0
    %159 = vmatpush2.msra.mxu0 0.0
    %160 = vmatprep.subr.mxu0 0.0
    %161 = vmatpush2.msra.mxu0 0.0
    %162 = vmatprep.subr.mxu0 0.0
    %163 = vmatpush2.msra.mxu0 0.0
    %164 = vmatprep.subr.mxu0 0.0
    %165 = vmatpush2.msra.mxu0 0.0
    %166 = vmatprep.subr.mxu0 0.0
    %167 = vmatpush2.msra.mxu0 0.0
    %168 = vmatprep.subr.mxu0 0.0
    %169 = vmatpush2.msra.mxu0 0.0
    %170 = vmatprep.subr.mxu0 0.0
    %171 = vmatpush2.msra.mxu0 0.0
    %172 = vmatprep.subr.mxu0 0.0
    %173 = vmatpush2.msra.mxu0 0.0
    %174 = vmatprep.subr.mxu0 0.0
    %175 = vmatpush2.msra.mxu0 0.0
    %176 = vmatprep.mubr.f32.mxu0 0.0
    %177 = vmatmul.mubr.f32.gmra.mxu0 %v106
    %v178 = vpop.f32.mrf.mxu0
    %v179 = vadd.f32 %v102, %v178
    %v180 = vpop.f32.mrf.mxu0
    %181 = vdwg.mxu0
    %v182 = vand.u32 2147483647, %v179
    %v183 = vmul.f32 %v182, -2.0
    %v184 = vmul.f32 %v183, 1.442695
    %v185 = vpow.pop %v184
    %v186 = vsub.f32 0.6931472, %v182
    %v187 = vadd.f32 %v185, 1.0
    %v188 = vlog2.pop %v187
    %v189 = vmul.f32 %v188, 0.6931472
    %v190 = vmul.f32 -0.5, %v185
    %v191 = vadd.f32 %v190, 1.0
    %v192 = vmul.f32 %v191, %v185
    %v193 = vand.u32 2147483647, %v185
    %vm194 = vcmp.lt.f32.partialorder %v193, 0.0004427343
    %v195 = vsel %vm194, %v192, %v189
    %v196 = vsub.f32 %v186, %v195
    %v197 = vmul.f32 %v196, 2.0
    %v198 = vtanh.pop %v179
    %v199 = vadd.f32 %v94, %v197
    %v200 = vld [vmem:[#allocation5] sm:$0xff]
    %v201 = vld [vmem:[#allocation5 + $0x8] sm:$0xff]
    %v202 = vld [vmem:[#allocation5 + $0x10] sm:$0xff]
    %v203 = vld [vmem:[#allocation5 + $0x18] sm:$0xff]
    %v204 = vld [vmem:[#allocation5 + $0x20] sm:$0xff]
    %v205 = vld [vmem:[#allocation5 + $0x28] sm:$0xff]
    %v206 = vld [vmem:[#allocation5 + $0x30] sm:$0xff]
    %v207 = vld [vmem:[#allocation5 + $0x38] sm:$0xff]
    %v208 = vld [vmem:[#allocation5 + $0x40] sm:$0xff]
    %v209 = vld [vmem:[#allocation5 + $0x48] sm:$0xff]
    %v210 = vld [vmem:[#allocation5 + $0x50] sm:$0xff]
    %v211 = vld [vmem:[#allocation5 + $0x58] sm:$0xff]
    %v212 = vld [vmem:[#allocation5 + $0x60] sm:$0xff]
    %v213 = vld [vmem:[#allocation5 + $0x68] sm:$0xff]
    %v214 = vld [vmem:[#allocation5 + $0x70] sm:$0xff]
    %v215 = vld [vmem:[#allocation5 + $0x78] sm:$0xff]
    %v216 = vlaneseq
    %v217 = vand.u32 %v216, 127
    %vm218 = vcmp.ge.s32.totalorder %v217, 0
    %vm219 = vcmp.lt.s32.totalorder %v217, 8
    %vm220 = vmand %vm218, %vm219
    %vm221 = vcmp.ge.s32.totalorder %v217, 8
    %vm222 = vcmp.lt.s32.totalorder %v217, 16
    %vm223 = vmand %vm221, %vm222
    %vm224 = vcmp.ge.s32.totalorder %v217, 16
    %vm225 = vcmp.lt.s32.totalorder %v217, 24
    %vm226 = vmand %vm224, %vm225
    %vm227 = vcmp.ge.s32.totalorder %v217, 24
    %vm228 = vcmp.lt.s32.totalorder %v217, 32
    %vm229 = vmand %vm227, %vm228
    %v230 = vsel %vm220, %v199, -1e+30
    %231 = vmax.xlane.f32.xlu0 %v230
    %v232 = vpop.xlane.xlu0 %231
    %v233 = vsel %vm220, %v232, 0.0
    %v234 = vsel %vm223, %v199, -1e+30
    %235 = vmax.xlane.f32.xlu0 %v234
    %v236 = vpop.xlane.xlu0 %235
    %v237 = vsel %vm223, %v236, %v233
    %v238 = vsel %vm226, %v199, -1e+30
    %239 = vmax.xlane.f32.xlu0 %v238
    %v240 = vpop.xlane.xlu0 %239
    %v241 = vsel %vm226, %v240, %v237
    %v242 = vsel %vm229, %v199, -1e+30
    %243 = vmax.xlane.f32.xlu0 %v242
    %v244 = vpop.xlane.xlu0 %243
    %v245 = vsel %vm229, %v244, %v241
    %v246 = vsub.f32 %v199, %v245
    %v247 = vmul.f32 %v246, 1.442695
    %v248 = vpow.pop %v247
    %249 = vmatprep.subr.mxu0 0.0
    %250 = vmatpush1.msra.mxu0 %v215
    %251 = vmatprep.subr.mxu0 0.0
    %252 = vmatpush1.msra.mxu0 %v214
    %253 = vmatprep.subr.mxu0 0.0
    %254 = vmatpush1.msra.mxu0 %v213
    %255 = vmatprep.subr.mxu0 0.0
    %256 = vmatpush1.msra.mxu0 %v212
    %257 = vmatprep.subr.mxu0 0.0
    %258 = vmatpush1.msra.mxu0 %v211
    %259 = vmatprep.subr.mxu0 0.0
    %260 = vmatpush1.msra.mxu0 %v210
    %261 = vmatprep.subr.mxu0 0.0
    %262 = vmatpush1.msra.mxu0 %v209
    %263 = vmatprep.subr.mxu0 0.0
    %264 = vmatpush1.msra.mxu0 %v208
    %265 = vmatprep.subr.mxu0 0.0
    %266 = vmatpush1.msra.mxu0 %v207
    %267 = vmatprep.subr.mxu0 0.0
    %268 = vmatpush1.msra.mxu0 %v206
    %269 = vmatprep.subr.mxu0 0.0
    %270 = vmatpush1.msra.mxu0 %v205
    %271 = vmatprep.subr.mxu0 0.0
    %272 = vmatpush1.msra.mxu0 %v204
    %273 = vmatprep.subr.mxu0 0.0
    %274 = vmatpush1.msra.mxu0 %v203
    %275 = vmatprep.subr.mxu0 0.0
    %276 = vmatpush1.msra.mxu0 %v202
    %277 = vmatprep.subr.mxu0 0.0
    %278 = vmatpush1.msra.mxu0 %v201
    %279 = vmatprep.subr.mxu0 0.0
    %280 = vmatpush1.msra.mxu0 %v200
    %281 = vmatprep.subr.mxu0 0.0
    %282 = vmatpush2.msra.mxu0 0.0
    %283 = vmatprep.subr.mxu0 0.0
    %284 = vmatpush2.msra.mxu0 0.0
    %285 = vmatprep.subr.mxu0 0.0
    %286 = vmatpush2.msra.mxu0 0.0
    %287 = vmatprep.subr.mxu0 0.0
    %288 = vmatpush2.msra.mxu0 0.0
    %289 = vmatprep.subr.mxu0 0.0
    %290 = vmatpush2.msra.mxu0 0.0
    %291 = vmatprep.subr.mxu0 0.0
    %292 = vmatpush2.msra.mxu0 0.0
    %293 = vmatprep.subr.mxu0 0.0
    %294 = vmatpush2.msra.mxu0 0.0
    %295 = vmatprep.subr.mxu0 0.0
    %296 = vmatpush2.msra.mxu0 0.0
    %297 = vmatprep.subr.mxu0 0.0
    %298 = vmatpush2.msra.mxu0 0.0
    %299 = vmatprep.subr.mxu0 0.0
    %300 = vmatpush2.msra.mxu0 0.0
    %301 = vmatprep.subr.mxu0 0.0
    %302 = vmatpush2.msra.mxu0 0.0
    %303 = vmatprep.subr.mxu0 0.0
    %304 = vmatpush2.msra.mxu0 0.0
    %305 = vmatprep.subr.mxu0 0.0
    %306 = vmatpush2.msra.mxu0 0.0
    %307 = vmatprep.subr.mxu0 0.0
    %308 = vmatpush2.msra.mxu0 0.0
    %309 = vmatprep.subr.mxu0 0.0
    %310 = vmatpush2.msra.mxu0 0.0
    %311 = vmatprep.subr.mxu0 0.0
    %312 = vmatpush2.msra.mxu0 0.0
    %313 = vmatprep.mubr.f32.mxu0 0.0
    %314 = vmatmul.mubr.f32.gmra.mxu0 %v248
    %v315 = vpop.f32.mrf.mxu0
    %v316 = vadd.f32 0.0, %v315
    %v317 = vpop.f32.mrf.mxu0
    %318 = vdwg.mxu0
    %v319 = vmax.f32 %v316, 1e-37
    %v320 = vlog2.pop %v319
    %v321 = vmul.f32 %v320, 0.6931472
    %v322 = vadd.f32 %v321, %v245
    %v323 = vld [vmem:[#allocation2] sm:$0xff]
    %v324 = vld [vmem:[#allocation2 + $0x8] sm:$0xff]
    %v325 = vld [vmem:[#allocation2 + $0x10] sm:$0xff]
    %v326 = vld [vmem:[#allocation2 + $0x18] sm:$0xff]
    %v327 = vld [vmem:[#allocation2 + $0x20] sm:$0xff]
    %v328 = vld [vmem:[#allocation2 + $0x28] sm:$0xff]
    %v329 = vld [vmem:[#allocation2 + $0x30] sm:$0xff]
    %v330 = vld [vmem:[#allocation2 + $0x38] sm:$0xff]
    %v331 = vld [vmem:[#allocation2 + $0x40] sm:$0xff]
    %v332 = vld [vmem:[#allocation2 + $0x48] sm:$0xff]
    %v333 = vld [vmem:[#allocation2 + $0x50] sm:$0xff]
    %v334 = vld [vmem:[#allocation2 + $0x58] sm:$0xff]
    %v335 = vld [vmem:[#allocation2 + $0x60] sm:$0xff]
    %v336 = vld [vmem:[#allocation2 + $0x68] sm:$0xff]
    %v337 = vld [vmem:[#allocation2 + $0x70] sm:$0xff]
    %v338 = vld [vmem:[#allocation2 + $0x78] sm:$0xff]
    %v339 = vld [vmem:[%s5] sm:$0x1]
    %v341 = vlaneseq
    %v342 = vshrl.u32 %v341, 7
    %v343 = vsub.s32 0, %v342
    %v344 = vrot.slane %v339, %v343
    %346 = vmatprep.subr.mxu0 0.0
    %347 = vmatpush1.msra.mxu0 %v338
    %348 = vmatprep.subr.mxu0 0.0
    %349 = vmatpush1.msra.mxu0 %v337
    %350 = vmatprep.subr.mxu0 0.0
    %351 = vmatpush1.msra.mxu0 %v336
    %352 = vmatprep.subr.mxu0 0.0
    %353 = vmatpush1.msra.mxu0 %v335
    %354 = vmatprep.subr.mxu0 0.0
    %355 = vmatpush1.msra.mxu0 %v334
    %356 = vmatprep.subr.mxu0 0.0
    %357 = vmatpush1.msra.mxu0 %v333
    %358 = vmatprep.subr.mxu0 0.0
    %359 = vmatpush1.msra.mxu0 %v332
    %360 = vmatprep.subr.mxu0 0.0
    %361 = vmatpush1.msra.mxu0 %v331
    %362 = vmatprep.subr.mxu0 0.0
    %363 = vmatpush1.msra.mxu0 %v330
    %364 = vmatprep.subr.mxu0 0.0
    %365 = vmatpush1.msra.mxu0 %v329
    %366 = vmatprep.subr.mxu0 0.0
    %367 = vmatpush1.msra.mxu0 %v328
    %368 = vmatprep.subr.mxu0 0.0
    %369 = vmatpush1.msra.mxu0 %v327
    %370 = vmatprep.subr.mxu0 0.0
    %371 = vmatpush1.msra.mxu0 %v326
    %372 = vmatprep.subr.mxu0 0.0
    %373 = vmatpush1.msra.mxu0 %v325
    %374 = vmatprep.subr.mxu0 0.0
    %375 = vmatpush1.msra.mxu0 %v324
    %376 = vmatprep.subr.mxu0 0.0
    %377 = vmatpush1.msra.mxu0 %v323
    %378 = vmatprep.subr.mxu0 0.0
    %379 = vmatpush2.msra.mxu0 0.0
    %380 = vmatprep.subr.mxu0 0.0
    %381 = vmatpush2.msra.mxu0 0.0
    %382 = vmatprep.subr.mxu0 0.0
    %383 = vmatpush2.msra.mxu0 0.0
    %384 = vmatprep.subr.mxu0 0.0
    %385 = vmatpush2.msra.mxu0 0.0
    %386 = vmatprep.subr.mxu0 0.0
    %387 = vmatpush2.msra.mxu0 0.0
    %388 = vmatprep.subr.mxu0 0.0
    %389 = vmatpush2.msra.mxu0 0.0
    %390 = vmatprep.subr.mxu0 0.0
    %391 = vmatpush2.msra.mxu0 0.0
    %392 = vmatprep.subr.mxu0 0.0
    %393 = vmatpush2.msra.mxu0 0.0
    %394 = vmatprep.subr.mxu0 0.0
    %395 = vmatpush2.msra.mxu0 0.0
    %396 = vmatprep.subr.mxu0 0.0
    %397 = vmatpush2.msra.mxu0 0.0
    %398 = vmatprep.subr.mxu0 0.0
    %399 = vmatpush2.msra.mxu0 0.0
    %400 = vmatprep.subr.mxu0 0.0
    %401 = vmatpush2.msra.mxu0 0.0
    %402 = vmatprep.subr.mxu0 0.0
    %403 = vmatpush2.msra.mxu0 0.0
    %404 = vmatprep.subr.mxu0 0.0
    %405 = vmatpush2.msra.mxu0 0.0
    %406 = vmatprep.subr.mxu0 0.0
    %407 = vmatpush2.msra.mxu0 0.0
    %408 = vmatprep.subr.mxu0 0.0
    %409 = vmatpush2.msra.mxu0 0.0
    %410 = vmatprep.mubr.f32.mxu0 0.0
    %411 = vmatmul.mubr.f32.gmra.mxu0 %v198
    %v412 = vpop.f32.mrf.mxu0
    %v413 = vadd.f32 %v344, %v412
    %v414 = vpop.f32.mrf.mxu0
    %415 = vdwg.mxu0
    %v416 = vand.u32 2147483647, %v413
    %v417 = vmul.f32 %v416, -2.0
    %v418 = vmul.f32 %v417, 1.442695
    %v419 = vpow.pop %v418
    %v420 = vsub.f32 0.6931472, %v416
    %v421 = vadd.f32 %v419, 1.0
    %v422 = vlog2.pop %v421
    %v423 = vmul.f32 %v422, 0.6931472
    %v424 = vmul.f32 -0.5, %v419
    %v425 = vadd.f32 %v424, 1.0
    %v426 = vmul.f32 %v425, %v419
    %v427 = vand.u32 2147483647, %v419
    %vm428 = vcmp.lt.f32.partialorder %v427, 0.0004427343
    %v429 = vsel %vm428, %v426, %v423
    %v430 = vsub.f32 %v420, %v429
    %v431 = vmul.f32 %v430, 2.0
    %v432 = vtanh.pop %v413
    %v433 = vadd.f32 %v322, %v431
    %v434 = vld [vmem:[#allocation8] sm:$0xff]
    %v435 = vld [vmem:[#allocation8 + $0x8] sm:$0xff]
    %v436 = vld [vmem:[#allocation8 + $0x10] sm:$0xff]
    %v437 = vld [vmem:[#allocation8 + $0x18] sm:$0xff]
    %v438 = vld [vmem:[#allocation8 + $0x20] sm:$0xff]
    %v439 = vld [vmem:[#allocation8 + $0x28] sm:$0xff]
    %v440 = vld [vmem:[#allocation8 + $0x30] sm:$0xff]
    %v441 = vld [vmem:[#allocation8 + $0x38] sm:$0xff]
    %v442 = vld [vmem:[#allocation8 + $0x40] sm:$0xff]
    %v443 = vld [vmem:[#allocation8 + $0x48] sm:$0xff]
    %v444 = vld [vmem:[#allocation8 + $0x50] sm:$0xff]
    %v445 = vld [vmem:[#allocation8 + $0x58] sm:$0xff]
    %v446 = vld [vmem:[#allocation8 + $0x60] sm:$0xff]
    %v447 = vld [vmem:[#allocation8 + $0x68] sm:$0xff]
    %v448 = vld [vmem:[#allocation8 + $0x70] sm:$0xff]
    %v449 = vld [vmem:[#allocation8 + $0x78] sm:$0xff]
    %vm450 = vcmp.lt.s32.totalorder %v217, 1
    %vm451 = vmand %vm218, %vm450
    %vm452 = vcmp.ge.s32.totalorder %v217, 1
    %vm453 = vcmp.lt.s32.totalorder %v217, 2
    %vm454 = vmand %vm452, %vm453
    %vm455 = vcmp.ge.s32.totalorder %v217, 2
    %vm456 = vcmp.lt.s32.totalorder %v217, 3
    %vm457 = vmand %vm455, %vm456
    %vm458 = vcmp.ge.s32.totalorder %v217, 3
    %vm459 = vcmp.lt.s32.totalorder %v217, 4
    %vm460 = vmand %vm458, %vm459
    %v461 = vsel %vm220, %v433, -1e+30
    %462 = vmax.xlane.f32.xlu0 %v461
    %v463 = vpop.xlane.xlu0 %462
    %v464 = vsel %vm220, %v463, 0.0
    %v465 = vsel %vm451, %v463, 0.0
    %v466 = vsel %vm223, %v433, -1e+30
    %467 = vmax.xlane.f32.xlu0 %v466
    %v468 = vpop.xlane.xlu0 %467
    %v469 = vsel %vm223, %v468, %v464
    %v470 = vsel %vm454, %v468, %v465
    %v471 = vsel %vm226, %v433, -1e+30
    %472 = vmax.xlane.f32.xlu0 %v471
    %v473 = vpop.xlane.xlu0 %472
    %v474 = vsel %vm226, %v473, %v469
    %v475 = vsel %vm457, %v473, %v470
    %v476 = vsel %vm229, %v433, -1e+30
    %477 = vmax.xlane.f32.xlu0 %v476
    %v478 = vpop.xlane.xlu0 %477
    %v479 = vsel %vm229, %v478, %v474
    %v480 = vsel %vm460, %v478, %v475
    %v481 = vsub.f32 %v433, %v479
    %v482 = vmul.f32 %v481, 1.442695
    %v483 = vpow.pop %v482
    %484 = vmatprep.subr.mxu0 0.0
    %485 = vmatpush1.msra.mxu0 %v449
    %486 = vmatprep.subr.mxu0 0.0
    %487 = vmatpush1.msra.mxu0 %v448
    %488 = vmatprep.subr.mxu0 0.0
    %489 = vmatpush1.msra.mxu0 %v447
    %490 = vmatprep.subr.mxu0 0.0
    %491 = vmatpush1.msra.mxu0 %v446
    %492 = vmatprep.subr.mxu0 0.0
    %493 = vmatpush1.msra.mxu0 %v445
    %494 = vmatprep.subr.mxu0 0.0
    %495 = vmatpush1.msra.mxu0 %v444
    %496 = vmatprep.subr.mxu0 0.0
    %497 = vmatpush1.msra.mxu0 %v443
    %498 = vmatprep.subr.mxu0 0.0
    %499 = vmatpush1.msra.mxu0 %v442
    %500 = vmatprep.subr.mxu0 0.0
    %501 = vmatpush1.msra.mxu0 %v441
    %502 = vmatprep.subr.mxu0 0.0
    %503 = vmatpush1.msra.mxu0 %v440
    %504 = vmatprep.subr.mxu0 0.0
    %505 = vmatpush1.msra.mxu0 %v439
    %506 = vmatprep.subr.mxu0 0.0
    %507 = vmatpush1.msra.mxu0 %v438
    %508 = vmatprep.subr.mxu0 0.0
    %509 = vmatpush1.msra.mxu0 %v437
    %510 = vmatprep.subr.mxu0 0.0
    %511 = vmatpush1.msra.mxu0 %v436
    %512 = vmatprep.subr.mxu0 0.0
    %513 = vmatpush1.msra.mxu0 %v435
    %514 = vmatprep.subr.mxu0 0.0
    %515 = vmatpush1.msra.mxu0 %v434
    %516 = vmatprep.subr.mxu0 0.0
    %517 = vmatpush2.msra.mxu0 0.0
    %518 = vmatprep.subr.mxu0 0.0
    %519 = vmatpush2.msra.mxu0 0.0
    %520 = vmatprep.subr.mxu0 0.0
    %521 = vmatpush2.msra.mxu0 0.0
    %522 = vmatprep.subr.mxu0 0.0
    %523 = vmatpush2.msra.mxu0 0.0
    %524 = vmatprep.subr.mxu0 0.0
    %525 = vmatpush2.msra.mxu0 0.0
    %526 = vmatprep.subr.mxu0 0.0
    %527 = vmatpush2.msra.mxu0 0.0
    %528 = vmatprep.subr.mxu0 0.0
    %529 = vmatpush2.msra.mxu0 0.0
    %530 = vmatprep.subr.mxu0 0.0
    %531 = vmatpush2.msra.mxu0 0.0
    %532 = vmatprep.subr.mxu0 0.0
    %533 = vmatpush2.msra.mxu0 0.0
    %534 = vmatprep.subr.mxu0 0.0
    %535 = vmatpush2.msra.mxu0 0.0
    %536 = vmatprep.subr.mxu0 0.0
    %537 = vmatpush2.msra.mxu0 0.0
    %538 = vmatprep.subr.mxu0 0.0
    %539 = vmatpush2.msra.mxu0 0.0
    %540 = vmatprep.subr.mxu0 0.0
    %541 = vmatpush2.msra.mxu0 0.0
    %542 = vmatprep.subr.mxu0 0.0
    %543 = vmatpush2.msra.mxu0 0.0
    %544 = vmatprep.subr.mxu0 0.0
    %545 = vmatpush2.msra.mxu0 0.0
    %546 = vmatprep.subr.mxu0 0.0
    %547 = vmatpush2.msra.mxu0 0.0
    %548 = vmatprep.mubr.f32.mxu0 0.0
    %549 = vmatmul.mubr.f32.gmra.mxu0 %v483
    %v550 = vpop.f32.mrf.mxu0
    %v551 = vadd.f32 0.0, %v550
    %v552 = vpop.f32.mrf.mxu0
    %553 = vdwg.mxu0
    %v554 = vmax.f32 %v551, 1e-37
    %v555 = vlog2.pop %v554
    %v556 = vmul.f32 %v555, 0.6931472
    %v557 = vadd.f32 %v556, %v480
    %v558 = vld [vmem:[#allocation7] sm:$0xff]
    %v559 = vld [vmem:[#allocation7 + $0x8] sm:$0xff]
    %v560 = vld [vmem:[#allocation7 + $0x10] sm:$0xff]
    %v561 = vld [vmem:[#allocation7 + $0x18] sm:$0xff]
    %v562 = vld [vmem:[#allocation7 + $0x20] sm:$0xff]
    %v563 = vld [vmem:[#allocation7 + $0x28] sm:$0xff]
    %v564 = vld [vmem:[#allocation7 + $0x30] sm:$0xff]
    %v565 = vld [vmem:[#allocation7 + $0x38] sm:$0xff]
    %v566 = vld [vmem:[#allocation7 + $0x40] sm:$0xff]
    %v567 = vld [vmem:[#allocation7 + $0x48] sm:$0xff]
    %v568 = vld [vmem:[#allocation7 + $0x50] sm:$0xff]
    %v569 = vld [vmem:[#allocation7 + $0x58] sm:$0xff]
    %v570 = vld [vmem:[#allocation7 + $0x60] sm:$0xff]
    %v571 = vld [vmem:[#allocation7 + $0x68] sm:$0xff]
    %v572 = vld [vmem:[#allocation7 + $0x70] sm:$0xff]
    %v573 = vld [vmem:[#allocation7 + $0x78] sm:$0xff]
    %574 = vmatprep.subr.mxu0 0.0
    %575 = vmatpush1.msra.mxu0 %v573
    %576 = vmatprep.subr.mxu0 0.0
    %577 = vmatpush1.msra.mxu0 %v572
    %578 = vmatprep.subr.mxu0 0.0
    %579 = vmatpush1.msra.mxu0 %v571
    %580 = vmatprep.subr.mxu0 0.0
    %581 = vmatpush1.msra.mxu0 %v570
    %582 = vmatprep.subr.mxu0 0.0
    %583 = vmatpush1.msra.mxu0 %v569
    %584 = vmatprep.subr.mxu0 0.0
    %585 = vmatpush1.msra.mxu0 %v568
    %586 = vmatprep.subr.mxu0 0.0
    %587 = vmatpush1.msra.mxu0 %v567
    %588 = vmatprep.subr.mxu0 0.0
    %589 = vmatpush1.msra.mxu0 %v566
    %590 = vmatprep.subr.mxu0 0.0
    %591 = vmatpush1.msra.mxu0 %v565
    %592 = vmatprep.subr.mxu0 0.0
    %593 = vmatpush1.msra.mxu0 %v564
    %594 = vmatprep.subr.mxu0 0.0
    %595 = vmatpush1.msra.mxu0 %v563
    %596 = vmatprep.subr.mxu0 0.0
    %597 = vmatpush1.msra.mxu0 %v562
    %598 = vmatprep.subr.mxu0 0.0
    %599 = vmatpush1.msra.mxu0 %v561
    %600 = vmatprep.subr.mxu0 0.0
    %601 = vmatpush1.msra.mxu0 %v560
    %602 = vmatprep.subr.mxu0 0.0
    %603 = vmatpush1.msra.mxu0 %v559
    %604 = vmatprep.subr.mxu0 0.0
    %605 = vmatpush1.msra.mxu0 %v558
    %606 = vmatprep.subr.mxu0 0.0
    %607 = vmatpush2.msra.mxu0 0.0
    %608 = vmatprep.subr.mxu0 0.0
    %609 = vmatpush2.msra.mxu0 0.0
    %610 = vmatprep.subr.mxu0 0.0
    %611 = vmatpush2.msra.mxu0 0.0
    %612 = vmatprep.subr.mxu0 0.0
    %613 = vmatpush2.msra.mxu0 0.0
    %614 = vmatprep.subr.mxu0 0.0
    %615 = vmatpush2.msra.mxu0 0.0
    %616 = vmatprep.subr.mxu0 0.0
    %617 = vmatpush2.msra.mxu0 0.0
    %618 = vmatprep.subr.mxu0 0.0
    %619 = vmatpush2.msra.mxu0 0.0
    %620 = vmatprep.subr.mxu0 0.0
    %621 = vmatpush2.msra.mxu0 0.0
    %622 = vmatprep.subr.mxu0 0.0
    %623 = vmatpush2.msra.mxu0 0.0
    %624 = vmatprep.subr.mxu0 0.0
    %625 = vmatpush2.msra.mxu0 0.0
    %626 = vmatprep.subr.mxu0 0.0
    %627 = vmatpush2.msra.mxu0 0.0
    %628 = vmatprep.subr.mxu0 0.0
    %629 = vmatpush2.msra.mxu0 0.0
    %630 = vmatprep.subr.mxu0 0.0
    %631 = vmatpush2.msra.mxu0 0.0
    %632 = vmatprep.subr.mxu0 0.0
    %633 = vmatpush2.msra.mxu0 0.0
    %634 = vmatprep.subr.mxu0 0.0
    %635 = vmatpush2.msra.mxu0 0.0
    %636 = vmatprep.subr.mxu0 0.0
    %637 = vmatpush2.msra.mxu0 0.0
    %638 = vmatprep.mubr.f32.mxu0 0.0
    %639 = vmatmul.mubr.f32.gmra.mxu0 %v432
    %v640 = vpop.f32.mrf.mxu0
    %v641 = vadd.f32 0.0, %v640
    %v642 = vpop.f32.mrf.mxu0
    %643 = vdwg.mxu0
    %v644 = vsel %vm459, %v557, 0.0
    %645 = vadd.xlane.f32.xlu0 %v644
    %v646 = vpop.xlane.xlu0 %645
    %vm647 = vcmp.eq.s32.totalorder %v217, 4
    %v648 = vsel %vm647, %v646, %v641
    %649 = vst [vmem:[#allocation10] sm:$0xff] %v648
    // Predicated region
    $region54: #{tpu_custom_call.1} parent=1 // pred_check
      _
    $region55: #{tpu_custom_call.1} parent=1 // pred_check_branch
      %651 = sbr.rel (0) target = $region57
    $region56: #{tpu_custom_call.1} parent=1 // pred_region
      %s653 = ssub.s32 128, 128
      %654 = vsyncadd [#allocation4], %s653
      %s656 = sshll.u32 [#allocation10], 4
      %s657 = int_to_ptr.vmem [resolvable:$true] %s656
      %659 = dma.vmem_to_hbm [thread:$0]  %s657, 128, %s9, [#allocation4]
    $region57: #{tpu_custom_call.1} parent=1 // pred_fallthru
      _
    // Predicated region
    $region58: #{tpu_custom_call.1} parent=1 // pred_check
      _
    $region59: #{tpu_custom_call.1} parent=1 // pred_check_branch
      %661 = sbr.rel (0) target = $region61
    $region60: #{tpu_custom_call.1} parent=1 // pred_region
      %662 = dma.done [#allocation4], 128
    $region61: #{tpu_custom_call.1} parent=1 // pred_fallthru
      _
    %663 = vsyncpa [#allocation3], 1
    %664 = vsyncpa [#allocation6], 1
    %665 = vsyncpa [#allocation9], 1
    %666 = vsyncpa [#allocation4], 1

// kernel: tpu_custom_call.1
$region0: #{tpu_custom_call.1}
  #allocation0 [shape = 'u32[]', space=smem, size = 0x4, offset = 0x4, fixed_abs, tag = 'smem constant byte address 0x4 - core index']
  #allocation1 [shape = 'u32[144,128]{1,0:T(1,128)}', space=vmem, size = 0x12000, scoped, tag = 'internal scratch']
  %s0 = inlined_call_operand.vmem [shape: f32[8,4], index: 0, kind: input, shape index: {}]
  %s1 = inlined_call_operand.vmem [shape: f32[1,128], index: 1, kind: input, shape index: {}]
  %s2 = inlined_call_operand.vmem [shape: f32[4,128], index: 2, kind: input, shape index: {}]
  %s3 = inlined_call_operand.vmem [shape: f32[1,128], index: 3, kind: input, shape index: {}]
  %s4 = inlined_call_operand.hbm [shape: f32[128,128], index: 4, kind: input, shape index: {}]
  %s5 = inlined_call_operand.vmem [shape: f32[1,128], index: 5, kind: input, shape index: {}]
  %s6 = inlined_call_operand.hbm [shape: f32[128,128], index: 6, kind: input, shape index: {}]
  %s7 = inlined_call_operand.hbm [shape: f32[128,128], index: 7, kind: input, shape index: {}]
  %s8 = inlined_call_operand.hbm [shape: f32[128,128], index: 8, kind: input, shape index: {}]
  %s9 = inlined_call_operand.hbm [shape: f32[8,128], index: 9, kind: output, shape index: {}]
  %s10 = sld [smem:[#allocation0]]
  $region62: #{tpu_custom_call.1} parent=0
    _
  %s12 = ssub.s32 1, %s10
  %s13 = scalar_select 0, %s12, %s10
  $region1: #{tpu_custom_call.1} parent=0
    #allocation2 [shape = 'u8[65536]{0}', space=vmem, size = 0x10000, scoped, tag = 'input window, operand 4, single buffered']
    #allocation3 [shape = 's32[1]{0}', space=sflag, size = 0x4, scoped, tag = 'scoped memory for tpu_custom_call.1']
    #allocation4 [shape = 's32[1]{0}', space=sflag, size = 0x4, scoped, tag = 'scoped memory for tpu_custom_call.1']
    #allocation5 [shape = 'u8[65536]{0}', space=vmem, size = 0x10000, scoped, tag = 'input window, operand 6, single buffered']
    #allocation6 [shape = 's32[1]{0}', space=sflag, size = 0x4, scoped, tag = 'scoped memory for tpu_custom_call.1']
    #allocation7 [shape = 'u8[65536]{0}', space=vmem, size = 0x10000, scoped, tag = 'input window, operand 7, single buffered']
    #allocation8 [shape = 'u8[65536]{0}', space=vmem, size = 0x10000, scoped, tag = 'input window, operand 8, single buffered']
    #allocation9 [shape = 's32[1]{0}', space=sflag, size = 0x4, scoped, tag = 'scoped memory for tpu_custom_call.1']
    #allocation10 [shape = 'u8[4096]{0}', space=vmem, size = 0x1000, scoped, tag = 'output window, operand 0, single buffered']
    %14 = vsyncpa [#allocation3], 0
    %15 = vsyncpa [#allocation6], 0
    %16 = vsyncpa [#allocation9], 0
    %17 = vsyncpa [#allocation4], 0
    // Predicated region
    $region2: #{tpu_custom_call.1} parent=1 // pred_check
      _
    $region3: #{tpu_custom_call.1} parent=1 // pred_check_branch
      %19 = sbr.rel (0) target = $region5
    $region4: #{tpu_custom_call.1} parent=1 // pred_region
      _
    $region5: #{tpu_custom_call.1} parent=1 // pred_fallthru
      _
    // Predicated region
    $region6: #{tpu_custom_call.1} parent=1 // pred_check
      _
    $region7: #{tpu_custom_call.1} parent=1 // pred_check_branch
      %21 = sbr.rel (0) target = $region9
    $region8: #{tpu_custom_call.1} parent=1 // pred_region
      _
    $region9: #{tpu_custom_call.1} parent=1 // pred_fallthru
      _
    // Predicated region
    $region10: #{tpu_custom_call.1} parent=1 // pred_check
      _
    $region11: #{tpu_custom_call.1} parent=1 // pred_check_branch
      %23 = sbr.rel (0) target = $region13
    $region12: #{tpu_custom_call.1} parent=1 // pred_region
      _
    $region13: #{tpu_custom_call.1} parent=1 // pred_fallthru
      _
    // Predicated region
    $region14: #{tpu_custom_call.1} parent=1 // pred_check
      _
    $region15: #{tpu_custom_call.1} parent=1 // pred_check_branch
      %25 = sbr.rel (0) target = $region17
    $region16: #{tpu_custom_call.1} parent=1 // pred_region
      _
    $region17: #{tpu_custom_call.1} parent=1 // pred_fallthru
      _
    // Predicated region
    $region18: #{tpu_custom_call.1} parent=1 // pred_check
      _
    $region19: #{tpu_custom_call.1} parent=1 // pred_check_branch
      %27 = sbr.rel (0) target = $region21
    $region20: #{tpu_custom_call.1} parent=1 // pred_region
      %s29 = ssub.s32 2048, 2048
      %30 = vsyncadd [#allocation3], %s29
      %s31 = sshll.u32 [#allocation2], 4
      %s32 = int_to_ptr.vmem [resolvable:$true] %s31
      %37 = dma.hbm_to_vmem [thread:$0]  %s4, 2048, %s32, [#allocation3], 128, 128, 8
    $region21: #{tpu_custom_call.1} parent=1 // pred_fallthru
      _
    // Predicated region
    $region22: #{tpu_custom_call.1} parent=1 // pred_check
      _
    $region23: #{tpu_custom_call.1} parent=1 // pred_check_branch
      %39 = sbr.rel (0) target = $region25
    $region24: #{tpu_custom_call.1} parent=1 // pred_region
      _
    $region25: #{tpu_custom_call.1} parent=1 // pred_fallthru
      _
    // Predicated region
    $region26: #{tpu_custom_call.1} parent=1 // pred_check
      _
    $region27: #{tpu_custom_call.1} parent=1 // pred_check_branch
      %41 = sbr.rel (0) target = $region29
    $region28: #{tpu_custom_call.1} parent=1 // pred_region
      %s43 = ssub.s32 2048, 2048
      %44 = vsyncadd [#allocation6], %s43
      %s45 = sshll.u32 [#allocation5], 4
      %s46 = int_to_ptr.vmem [resolvable:$true] %s45
      %51 = dma.hbm_to_vmem [thread:$0]  %s6, 2048, %s46, [#allocation6], 128, 128, 8
    $region29: #{tpu_custom_call.1} parent=1 // pred_fallthru
      _
    // Predicated region
    $region30: #{tpu_custom_call.1} parent=1 // pred_check
      _
    $region31: #{tpu_custom_call.1} parent=1 // pred_check_branch
      %53 = sbr.rel (0) target = $region33
    $region32: #{tpu_custom_call.1} parent=1 // pred_region
      %s55 = ssub.s32 2048, 2048
      %56 = vsyncadd [#allocation6], %s55
      %s57 = sshll.u32 [#allocation7], 4
      %s58 = int_to_ptr.vmem [resolvable:$true] %s57
      %63 = dma.hbm_to_vmem [thread:$0]  %s7, 2048, %s58, [#allocation6], 128, 128, 8
    $region33: #{tpu_custom_call.1} parent=1 // pred_fallthru
      _
    // Predicated region
    $region34: #{tpu_custom_call.1} parent=1 // pred_check
      _
    $region35: #{tpu_custom_call.1} parent=1 // pred_check_branch
      %65 = sbr.rel (0) target = $region37
    $region36: #{tpu_custom_call.1} parent=1 // pred_region
      %s67 = ssub.s32 2048, 2048
      %68 = vsyncadd [#allocation9], %s67
      %s69 = sshll.u32 [#allocation8], 4
      %s70 = int_to_ptr.vmem [resolvable:$true] %s69
      %75 = dma.hbm_to_vmem [thread:$0]  %s8, 2048, %s70, [#allocation9], 128, 128, 8
    $region37: #{tpu_custom_call.1} parent=1 // pred_fallthru
      _
    // Predicated region
    $region38: #{tpu_custom_call.1} parent=1 // pred_check
      _
    $region39: #{tpu_custom_call.1} parent=1 // pred_check_branch
      %77 = sbr.rel (0) target = $region41
    $region40: #{tpu_custom_call.1} parent=1 // pred_region
      %78 = dma.done [#allocation3], 2048
    $region41: #{tpu_custom_call.1} parent=1 // pred_fallthru
      _
    // Predicated region
    $region42: #{tpu_custom_call.1} parent=1 // pred_check
      _
    $region43: #{tpu_custom_call.1} parent=1 // pred_check_branch
      %80 = sbr.rel (0) target = $region45
    $region44: #{tpu_custom_call.1} parent=1 // pred_region
      %81 = dma.done [#allocation6], 2048
    $region45: #{tpu_custom_call.1} parent=1 // pred_fallthru
      _
    // Predicated region
    $region46: #{tpu_custom_call.1} parent=1 // pred_check
      _
    $region47: #{tpu_custom_call.1} parent=1 // pred_check_branch
      %83 = sbr.rel (0) target = $region49
    $region48: #{tpu_custom_call.1} parent=1 // pred_region
      %84 = dma.done [#allocation6], 2048
    $region49: #{tpu_custom_call.1} parent=1 // pred_fallthru
      _
    // Predicated region
    $region50: #{tpu_custom_call.1} parent=1 // pred_check
      _
    $region51: #{tpu_custom_call.1} parent=1 // pred_check_branch
      %86 = sbr.rel (0) target = $region53
    $region52: #{tpu_custom_call.1} parent=1 // pred_region
      %87 = dma.done [#allocation9], 2048
    $region53: #{tpu_custom_call.1} parent=1 // pred_fallthru
      _
    %v88 = vld [vmem:[%s0] sm:$0xff]
    %v89 = vld [vmem:[%s1] sm:$0x1]
    %v91 = vlaneseq
    %v92 = vshrl.u32 %v91, 7
    %v93 = vsub.s32 0, %v92
    %v94 = vrot.slane %v89, %v93
    %v96 = vld [vmem:[%s2] sm:$0xf]
    %v97 = vld [vmem:[%s3] sm:$0x1]
    %v99 = vlaneseq
    %v100 = vshrl.u32 %v99, 7
    %v101 = vsub.s32 0, %v100
    %v102 = vrot.slane %v97, %v101
    %vm104 = vcmask 31744
    %v106 = vsel %vm104, %v88, 0
    %vm108 = vcmask 1043456
    %v110 = vsel %vm108, %v96, 0
    %112 = vmatprep.subr.mxu0 0.0
    %113 = vmatpush1.msra.mxu0 0.0
    %114 = vmatprep.subr.mxu0 0.0
    %115 = vmatpush1.msra.mxu0 0.0
    %116 = vmatprep.subr.mxu0 0.0
    %117 = vmatpush1.msra.mxu0 0.0
    %118 = vmatprep.subr.mxu0 0.0
    %119 = vmatpush1.msra.mxu0 0.0
    %120 = vmatprep.subr.mxu0 0.0
    %121 = vmatpush1.msra.mxu0 0.0
    %122 = vmatprep.subr.mxu0 0.0
    %123 = vmatpush1.msra.mxu0 0.0
    %124 = vmatprep.subr.mxu0 0.0
    %125 = vmatpush1.msra.mxu0 0.0
    %126 = vmatprep.subr.mxu0 0.0
    %127 = vmatpush1.msra.mxu0 0.0
    %128 = vmatprep.subr.mxu0 0.0
    %129 = vmatpush1.msra.mxu0 0.0
    %130 = vmatprep.subr.mxu0 0.0
    %131 = vmatpush1.msra.mxu0 0.0
    %132 = vmatprep.subr.mxu0 0.0
    %133 = vmatpush1.msra.mxu0 0.0
    %134 = vmatprep.subr.mxu0 0.0
    %135 = vmatpush1.msra.mxu0 0.0
    %136 = vmatprep.subr.mxu0 0.0
    %137 = vmatpush1.msra.mxu0 0.0
    %138 = vmatprep.subr.mxu0 0.0
    %139 = vmatpush1.msra.mxu0 0.0
    %140 = vmatprep.subr.mxu0 0.0
    %141 = vmatpush1.msra.mxu0 0.0
    %142 = vmatprep.subr.mxu0 0.0
    %143 = vmatpush1.msra.mxu0 %v110
    %144 = vmatprep.subr.mxu0 0.0
    %145 = vmatpush2.msra.mxu0 0.0
    %146 = vmatprep.subr.mxu0 0.0
    %147 = vmatpush2.msra.mxu0 0.0
    %148 = vmatprep.subr.mxu0 0.0
    %149 = vmatpush2.msra.mxu0 0.0
    %150 = vmatprep.subr.mxu0 0.0
    %151 = vmatpush2.msra.mxu0 0.0
    %152 = vmatprep.subr.mxu0 0.0
    %153 = vmatpush2.msra.mxu0 0.0
    %154 = vmatprep.subr.mxu0 0.0
    %155 = vmatpush2.msra.mxu0 0.0
    %156 = vmatprep.subr.mxu0 0.0
    %157 = vmatpush2.msra.mxu0 0.0
    %158 = vmatprep.subr.mxu0 0.0
    %159 = vmatpush2.msra.mxu0 0.0
    %160 = vmatprep.subr.mxu0 0.0
    %161 = vmatpush2.msra.mxu0 0.0
    %162 = vmatprep.subr.mxu0 0.0
    %163 = vmatpush2.msra.mxu0 0.0
    %164 = vmatprep.subr.mxu0 0.0
    %165 = vmatpush2.msra.mxu0 0.0
    %166 = vmatprep.subr.mxu0 0.0
    %167 = vmatpush2.msra.mxu0 0.0
    %168 = vmatprep.subr.mxu0 0.0
    %169 = vmatpush2.msra.mxu0 0.0
    %170 = vmatprep.subr.mxu0 0.0
    %171 = vmatpush2.msra.mxu0 0.0
    %172 = vmatprep.subr.mxu0 0.0
    %173 = vmatpush2.msra.mxu0 0.0
    %174 = vmatprep.subr.mxu0 0.0
    %175 = vmatpush2.msra.mxu0 0.0
    %176 = vmatprep.mubr.f32.mxu0 0.0
    %177 = vmatmul.mubr.f32.gmra.mxu0 %v106
    %v178 = vpop.f32.mrf.mxu0
    %v179 = vadd.f32 %v102, %v178
    %v180 = vpop.f32.mrf.mxu0
    %181 = vdwg.mxu0
    %v182 = vand.u32 2147483647, %v179
    %v183 = vmul.f32 %v182, -2.0
    %v184 = vmul.f32 %v183, 1.442695
    %v185 = vpow.pop %v184
    %v186 = vsub.f32 0.6931472, %v182
    %v187 = vadd.f32 %v185, 1.0
    %v188 = vlog2.pop %v187
    %v189 = vmul.f32 %v188, 0.6931472
    %v190 = vmul.f32 -0.5, %v185
    %v191 = vadd.f32 %v190, 1.0
    %v192 = vmul.f32 %v191, %v185
    %v193 = vand.u32 2147483647, %v185
    %vm194 = vcmp.lt.f32.partialorder %v193, 0.0004427343
    %v195 = vsel %vm194, %v192, %v189
    %v196 = vsub.f32 %v186, %v195
    %v197 = vmul.f32 %v196, 2.0
    %v198 = vtanh.pop %v179
    %v199 = vadd.f32 %v94, %v197
    %v200 = vld [vmem:[#allocation5] sm:$0xff]
    %v201 = vld [vmem:[#allocation5 + $0x8] sm:$0xff]
    %v202 = vld [vmem:[#allocation5 + $0x10] sm:$0xff]
    %v203 = vld [vmem:[#allocation5 + $0x18] sm:$0xff]
    %v204 = vld [vmem:[#allocation5 + $0x20] sm:$0xff]
    %v205 = vld [vmem:[#allocation5 + $0x28] sm:$0xff]
    %v206 = vld [vmem:[#allocation5 + $0x30] sm:$0xff]
    %v207 = vld [vmem:[#allocation5 + $0x38] sm:$0xff]
    %v208 = vld [vmem:[#allocation5 + $0x40] sm:$0xff]
    %v209 = vld [vmem:[#allocation5 + $0x48] sm:$0xff]
    %v210 = vld [vmem:[#allocation5 + $0x50] sm:$0xff]
    %v211 = vld [vmem:[#allocation5 + $0x58] sm:$0xff]
    %v212 = vld [vmem:[#allocation5 + $0x60] sm:$0xff]
    %v213 = vld [vmem:[#allocation5 + $0x68] sm:$0xff]
    %v214 = vld [vmem:[#allocation5 + $0x70] sm:$0xff]
    %v215 = vld [vmem:[#allocation5 + $0x78] sm:$0xff]
    %v216 = vlaneseq
    %v217 = vand.u32 %v216, 127
    %vm218 = vcmp.ge.s32.totalorder %v217, 0
    %vm219 = vcmp.lt.s32.totalorder %v217, 8
    %vm220 = vmand %vm218, %vm219
    %vm221 = vcmp.ge.s32.totalorder %v217, 8
    %vm222 = vcmp.lt.s32.totalorder %v217, 16
    %vm223 = vmand %vm221, %vm222
    %vm224 = vcmp.ge.s32.totalorder %v217, 16
    %vm225 = vcmp.lt.s32.totalorder %v217, 24
    %vm226 = vmand %vm224, %vm225
    %vm227 = vcmp.ge.s32.totalorder %v217, 24
    %vm228 = vcmp.lt.s32.totalorder %v217, 32
    %vm229 = vmand %vm227, %vm228
    %v230 = vsel %vm220, %v199, -1e+30
    %231 = vmax.xlane.f32.xlu0 %v230
    %v232 = vpop.xlane.xlu0 %231
    %v233 = vsel %vm220, %v232, 0.0
    %v234 = vsel %vm223, %v199, -1e+30
    %235 = vmax.xlane.f32.xlu0 %v234
    %v236 = vpop.xlane.xlu0 %235
    %v237 = vsel %vm223, %v236, %v233
    %v238 = vsel %vm226, %v199, -1e+30
    %239 = vmax.xlane.f32.xlu0 %v238
    %v240 = vpop.xlane.xlu0 %239
    %v241 = vsel %vm226, %v240, %v237
    %v242 = vsel %vm229, %v199, -1e+30
    %243 = vmax.xlane.f32.xlu0 %v242
    %v244 = vpop.xlane.xlu0 %243
    %v245 = vsel %vm229, %v244, %v241
    %v246 = vsub.f32 %v199, %v245
    %v247 = vmul.f32 %v246, 1.442695
    %v248 = vpow.pop %v247
    %249 = vmatprep.subr.mxu0 0.0
    %250 = vmatpush1.msra.mxu0 %v215
    %251 = vmatprep.subr.mxu0 0.0
    %252 = vmatpush1.msra.mxu0 %v214
    %253 = vmatprep.subr.mxu0 0.0
    %254 = vmatpush1.msra.mxu0 %v213
    %255 = vmatprep.subr.mxu0 0.0
    %256 = vmatpush1.msra.mxu0 %v212
    %257 = vmatprep.subr.mxu0 0.0
    %258 = vmatpush1.msra.mxu0 %v211
    %259 = vmatprep.subr.mxu0 0.0
    %260 = vmatpush1.msra.mxu0 %v210
    %261 = vmatprep.subr.mxu0 0.0
    %262 = vmatpush1.msra.mxu0 %v209
    %263 = vmatprep.subr.mxu0 0.0
    %264 = vmatpush1.msra.mxu0 %v208
    %265 = vmatprep.subr.mxu0 0.0
    %266 = vmatpush1.msra.mxu0 %v207
    %267 = vmatprep.subr.mxu0 0.0
    %268 = vmatpush1.msra.mxu0 %v206
    %269 = vmatprep.subr.mxu0 0.0
    %270 = vmatpush1.msra.mxu0 %v205
    %271 = vmatprep.subr.mxu0 0.0
    %272 = vmatpush1.msra.mxu0 %v204
    %273 = vmatprep.subr.mxu0 0.0
    %274 = vmatpush1.msra.mxu0 %v203
    %275 = vmatprep.subr.mxu0 0.0
    %276 = vmatpush1.msra.mxu0 %v202
    %277 = vmatprep.subr.mxu0 0.0
    %278 = vmatpush1.msra.mxu0 %v201
    %279 = vmatprep.subr.mxu0 0.0
    %280 = vmatpush1.msra.mxu0 %v200
    %281 = vmatprep.subr.mxu0 0.0
    %282 = vmatpush2.msra.mxu0 0.0
    %283 = vmatprep.subr.mxu0 0.0
    %284 = vmatpush2.msra.mxu0 0.0
    %285 = vmatprep.subr.mxu0 0.0
    %286 = vmatpush2.msra.mxu0 0.0
    %287 = vmatprep.subr.mxu0 0.0
    %288 = vmatpush2.msra.mxu0 0.0
    %289 = vmatprep.subr.mxu0 0.0
    %290 = vmatpush2.msra.mxu0 0.0
    %291 = vmatprep.subr.mxu0 0.0
    %292 = vmatpush2.msra.mxu0 0.0
    %293 = vmatprep.subr.mxu0 0.0
    %294 = vmatpush2.msra.mxu0 0.0
    %295 = vmatprep.subr.mxu0 0.0
    %296 = vmatpush2.msra.mxu0 0.0
    %297 = vmatprep.subr.mxu0 0.0
    %298 = vmatpush2.msra.mxu0 0.0
    %299 = vmatprep.subr.mxu0 0.0
    %300 = vmatpush2.msra.mxu0 0.0
    %301 = vmatprep.subr.mxu0 0.0
    %302 = vmatpush2.msra.mxu0 0.0
    %303 = vmatprep.subr.mxu0 0.0
    %304 = vmatpush2.msra.mxu0 0.0
    %305 = vmatprep.subr.mxu0 0.0
    %306 = vmatpush2.msra.mxu0 0.0
    %307 = vmatprep.subr.mxu0 0.0
    %308 = vmatpush2.msra.mxu0 0.0
    %309 = vmatprep.subr.mxu0 0.0
    %310 = vmatpush2.msra.mxu0 0.0
    %311 = vmatprep.subr.mxu0 0.0
    %312 = vmatpush2.msra.mxu0 0.0
    %313 = vmatprep.mubr.f32.mxu0 0.0
    %314 = vmatmul.mubr.f32.gmra.mxu0 %v248
    %v315 = vpop.f32.mrf.mxu0
    %v316 = vadd.f32 0.0, %v315
    %v317 = vpop.f32.mrf.mxu0
    %318 = vdwg.mxu0
    %v319 = vmax.f32 %v316, 1e-37
    %v320 = vlog2.pop %v319
    %v321 = vmul.f32 %v320, 0.6931472
    %v322 = vadd.f32 %v321, %v245
    %v323 = vld [vmem:[#allocation2] sm:$0xff]
    %v324 = vld [vmem:[#allocation2 + $0x8] sm:$0xff]
    %v325 = vld [vmem:[#allocation2 + $0x10] sm:$0xff]
    %v326 = vld [vmem:[#allocation2 + $0x18] sm:$0xff]
    %v327 = vld [vmem:[#allocation2 + $0x20] sm:$0xff]
    %v328 = vld [vmem:[#allocation2 + $0x28] sm:$0xff]
    %v329 = vld [vmem:[#allocation2 + $0x30] sm:$0xff]
    %v330 = vld [vmem:[#allocation2 + $0x38] sm:$0xff]
    %v331 = vld [vmem:[#allocation2 + $0x40] sm:$0xff]
    %v332 = vld [vmem:[#allocation2 + $0x48] sm:$0xff]
    %v333 = vld [vmem:[#allocation2 + $0x50] sm:$0xff]
    %v334 = vld [vmem:[#allocation2 + $0x58] sm:$0xff]
    %v335 = vld [vmem:[#allocation2 + $0x60] sm:$0xff]
    %v336 = vld [vmem:[#allocation2 + $0x68] sm:$0xff]
    %v337 = vld [vmem:[#allocation2 + $0x70] sm:$0xff]
    %v338 = vld [vmem:[#allocation2 + $0x78] sm:$0xff]
    %v339 = vld [vmem:[%s5] sm:$0x1]
    %v341 = vlaneseq
    %v342 = vshrl.u32 %v341, 7
    %v343 = vsub.s32 0, %v342
    %v344 = vrot.slane %v339, %v343
    %346 = vmatprep.subr.mxu0 0.0
    %347 = vmatpush1.msra.mxu0 %v338
    %348 = vmatprep.subr.mxu0 0.0
    %349 = vmatpush1.msra.mxu0 %v337
    %350 = vmatprep.subr.mxu0 0.0
    %351 = vmatpush1.msra.mxu0 %v336
    %352 = vmatprep.subr.mxu0 0.0
    %353 = vmatpush1.msra.mxu0 %v335
    %354 = vmatprep.subr.mxu0 0.0
    %355 = vmatpush1.msra.mxu0 %v334
    %356 = vmatprep.subr.mxu0 0.0
    %357 = vmatpush1.msra.mxu0 %v333
    %358 = vmatprep.subr.mxu0 0.0
    %359 = vmatpush1.msra.mxu0 %v332
    %360 = vmatprep.subr.mxu0 0.0
    %361 = vmatpush1.msra.mxu0 %v331
    %362 = vmatprep.subr.mxu0 0.0
    %363 = vmatpush1.msra.mxu0 %v330
    %364 = vmatprep.subr.mxu0 0.0
    %365 = vmatpush1.msra.mxu0 %v329
    %366 = vmatprep.subr.mxu0 0.0
    %367 = vmatpush1.msra.mxu0 %v328
    %368 = vmatprep.subr.mxu0 0.0
    %369 = vmatpush1.msra.mxu0 %v327
    %370 = vmatprep.subr.mxu0 0.0
    %371 = vmatpush1.msra.mxu0 %v326
    %372 = vmatprep.subr.mxu0 0.0
    %373 = vmatpush1.msra.mxu0 %v325
    %374 = vmatprep.subr.mxu0 0.0
    %375 = vmatpush1.msra.mxu0 %v324
    %376 = vmatprep.subr.mxu0 0.0
    %377 = vmatpush1.msra.mxu0 %v323
    %378 = vmatprep.subr.mxu0 0.0
    %379 = vmatpush2.msra.mxu0 0.0
    %380 = vmatprep.subr.mxu0 0.0
    %381 = vmatpush2.msra.mxu0 0.0
    %382 = vmatprep.subr.mxu0 0.0
    %383 = vmatpush2.msra.mxu0 0.0
    %384 = vmatprep.subr.mxu0 0.0
    %385 = vmatpush2.msra.mxu0 0.0
    %386 = vmatprep.subr.mxu0 0.0
    %387 = vmatpush2.msra.mxu0 0.0
    %388 = vmatprep.subr.mxu0 0.0
    %389 = vmatpush2.msra.mxu0 0.0
    %390 = vmatprep.subr.mxu0 0.0
    %391 = vmatpush2.msra.mxu0 0.0
    %392 = vmatprep.subr.mxu0 0.0
    %393 = vmatpush2.msra.mxu0 0.0
    %394 = vmatprep.subr.mxu0 0.0
    %395 = vmatpush2.msra.mxu0 0.0
    %396 = vmatprep.subr.mxu0 0.0
    %397 = vmatpush2.msra.mxu0 0.0
    %398 = vmatprep.subr.mxu0 0.0
    %399 = vmatpush2.msra.mxu0 0.0
    %400 = vmatprep.subr.mxu0 0.0
    %401 = vmatpush2.msra.mxu0 0.0
    %402 = vmatprep.subr.mxu0 0.0
    %403 = vmatpush2.msra.mxu0 0.0
    %404 = vmatprep.subr.mxu0 0.0
    %405 = vmatpush2.msra.mxu0 0.0
    %406 = vmatprep.subr.mxu0 0.0
    %407 = vmatpush2.msra.mxu0 0.0
    %408 = vmatprep.subr.mxu0 0.0
    %409 = vmatpush2.msra.mxu0 0.0
    %410 = vmatprep.mubr.f32.mxu0 0.0
    %411 = vmatmul.mubr.f32.gmra.mxu0 %v198
    %v412 = vpop.f32.mrf.mxu0
    %v413 = vadd.f32 %v344, %v412
    %v414 = vpop.f32.mrf.mxu0
    %415 = vdwg.mxu0
    %v416 = vand.u32 2147483647, %v413
    %v417 = vmul.f32 %v416, -2.0
    %v418 = vmul.f32 %v417, 1.442695
    %v419 = vpow.pop %v418
    %v420 = vsub.f32 0.6931472, %v416
    %v421 = vadd.f32 %v419, 1.0
    %v422 = vlog2.pop %v421
    %v423 = vmul.f32 %v422, 0.6931472
    %v424 = vmul.f32 -0.5, %v419
    %v425 = vadd.f32 %v424, 1.0
    %v426 = vmul.f32 %v425, %v419
    %v427 = vand.u32 2147483647, %v419
    %vm428 = vcmp.lt.f32.partialorder %v427, 0.0004427343
    %v429 = vsel %vm428, %v426, %v423
    %v430 = vsub.f32 %v420, %v429
    %v431 = vmul.f32 %v430, 2.0
    %v432 = vtanh.pop %v413
    %v433 = vadd.f32 %v322, %v431
    %v434 = vld [vmem:[#allocation8] sm:$0xff]
    %v435 = vld [vmem:[#allocation8 + $0x8] sm:$0xff]
    %v436 = vld [vmem:[#allocation8 + $0x10] sm:$0xff]
    %v437 = vld [vmem:[#allocation8 + $0x18] sm:$0xff]
    %v438 = vld [vmem:[#allocation8 + $0x20] sm:$0xff]
    %v439 = vld [vmem:[#allocation8 + $0x28] sm:$0xff]
    %v440 = vld [vmem:[#allocation8 + $0x30] sm:$0xff]
    %v441 = vld [vmem:[#allocation8 + $0x38] sm:$0xff]
    %v442 = vld [vmem:[#allocation8 + $0x40] sm:$0xff]
    %v443 = vld [vmem:[#allocation8 + $0x48] sm:$0xff]
    %v444 = vld [vmem:[#allocation8 + $0x50] sm:$0xff]
    %v445 = vld [vmem:[#allocation8 + $0x58] sm:$0xff]
    %v446 = vld [vmem:[#allocation8 + $0x60] sm:$0xff]
    %v447 = vld [vmem:[#allocation8 + $0x68] sm:$0xff]
    %v448 = vld [vmem:[#allocation8 + $0x70] sm:$0xff]
    %v449 = vld [vmem:[#allocation8 + $0x78] sm:$0xff]
    %vm450 = vcmp.lt.s32.totalorder %v217, 1
    %vm451 = vmand %vm218, %vm450
    %vm452 = vcmp.ge.s32.totalorder %v217, 1
    %vm453 = vcmp.lt.s32.totalorder %v217, 2
    %vm454 = vmand %vm452, %vm453
    %vm455 = vcmp.ge.s32.totalorder %v217, 2
    %vm456 = vcmp.lt.s32.totalorder %v217, 3
    %vm457 = vmand %vm455, %vm456
    %vm458 = vcmp.ge.s32.totalorder %v217, 3
    %vm459 = vcmp.lt.s32.totalorder %v217, 4
    %vm460 = vmand %vm458, %vm459
    %v461 = vsel %vm220, %v433, -1e+30
    %462 = vmax.xlane.f32.xlu0 %v461
    %v463 = vpop.xlane.xlu0 %462
    %v464 = vsel %vm220, %v463, 0.0
    %v465 = vsel %vm451, %v463, 0.0
    %v466 = vsel %vm223, %v433, -1e+30
    %467 = vmax.xlane.f32.xlu0 %v466
    %v468 = vpop.xlane.xlu0 %467
    %v469 = vsel %vm223, %v468, %v464
    %v470 = vsel %vm454, %v468, %v465
    %v471 = vsel %vm226, %v433, -1e+30
    %472 = vmax.xlane.f32.xlu0 %v471
    %v473 = vpop.xlane.xlu0 %472
    %v474 = vsel %vm226, %v473, %v469
    %v475 = vsel %vm457, %v473, %v470
    %v476 = vsel %vm229, %v433, -1e+30
    %477 = vmax.xlane.f32.xlu0 %v476
    %v478 = vpop.xlane.xlu0 %477
    %v479 = vsel %vm229, %v478, %v474
    %v480 = vsel %vm460, %v478, %v475
    %v481 = vsub.f32 %v433, %v479
    %v482 = vmul.f32 %v481, 1.442695
    %v483 = vpow.pop %v482
    %484 = vmatprep.subr.mxu0 0.0
    %485 = vmatpush1.msra.mxu0 %v449
    %486 = vmatprep.subr.mxu0 0.0
    %487 = vmatpush1.msra.mxu0 %v448
    %488 = vmatprep.subr.mxu0 0.0
    %489 = vmatpush1.msra.mxu0 %v447
    %490 = vmatprep.subr.mxu0 0.0
    %491 = vmatpush1.msra.mxu0 %v446
    %492 = vmatprep.subr.mxu0 0.0
    %493 = vmatpush1.msra.mxu0 %v445
    %494 = vmatprep.subr.mxu0 0.0
    %495 = vmatpush1.msra.mxu0 %v444
    %496 = vmatprep.subr.mxu0 0.0
    %497 = vmatpush1.msra.mxu0 %v443
    %498 = vmatprep.subr.mxu0 0.0
    %499 = vmatpush1.msra.mxu0 %v442
    %500 = vmatprep.subr.mxu0 0.0
    %501 = vmatpush1.msra.mxu0 %v441
    %502 = vmatprep.subr.mxu0 0.0
    %503 = vmatpush1.msra.mxu0 %v440
    %504 = vmatprep.subr.mxu0 0.0
    %505 = vmatpush1.msra.mxu0 %v439
    %506 = vmatprep.subr.mxu0 0.0
    %507 = vmatpush1.msra.mxu0 %v438
    %508 = vmatprep.subr.mxu0 0.0
    %509 = vmatpush1.msra.mxu0 %v437
    %510 = vmatprep.subr.mxu0 0.0
    %511 = vmatpush1.msra.mxu0 %v436
    %512 = vmatprep.subr.mxu0 0.0
    %513 = vmatpush1.msra.mxu0 %v435
    %514 = vmatprep.subr.mxu0 0.0
    %515 = vmatpush1.msra.mxu0 %v434
    %516 = vmatprep.subr.mxu0 0.0
    %517 = vmatpush2.msra.mxu0 0.0
    %518 = vmatprep.subr.mxu0 0.0
    %519 = vmatpush2.msra.mxu0 0.0
    %520 = vmatprep.subr.mxu0 0.0
    %521 = vmatpush2.msra.mxu0 0.0
    %522 = vmatprep.subr.mxu0 0.0
    %523 = vmatpush2.msra.mxu0 0.0
    %524 = vmatprep.subr.mxu0 0.0
    %525 = vmatpush2.msra.mxu0 0.0
    %526 = vmatprep.subr.mxu0 0.0
    %527 = vmatpush2.msra.mxu0 0.0
    %528 = vmatprep.subr.mxu0 0.0
    %529 = vmatpush2.msra.mxu0 0.0
    %530 = vmatprep.subr.mxu0 0.0
    %531 = vmatpush2.msra.mxu0 0.0
    %532 = vmatprep.subr.mxu0 0.0
    %533 = vmatpush2.msra.mxu0 0.0
    %534 = vmatprep.subr.mxu0 0.0
    %535 = vmatpush2.msra.mxu0 0.0
    %536 = vmatprep.subr.mxu0 0.0
    %537 = vmatpush2.msra.mxu0 0.0
    %538 = vmatprep.subr.mxu0 0.0
    %539 = vmatpush2.msra.mxu0 0.0
    %540 = vmatprep.subr.mxu0 0.0
    %541 = vmatpush2.msra.mxu0 0.0
    %542 = vmatprep.subr.mxu0 0.0
    %543 = vmatpush2.msra.mxu0 0.0
    %544 = vmatprep.subr.mxu0 0.0
    %545 = vmatpush2.msra.mxu0 0.0
    %546 = vmatprep.subr.mxu0 0.0
    %547 = vmatpush2.msra.mxu0 0.0
    %548 = vmatprep.mubr.f32.mxu0 0.0
    %549 = vmatmul.mubr.f32.gmra.mxu0 %v483
    %v550 = vpop.f32.mrf.mxu0
    %v551 = vadd.f32 0.0, %v550
    %v552 = vpop.f32.mrf.mxu0
    %553 = vdwg.mxu0
    %v554 = vmax.f32 %v551, 1e-37
    %v555 = vlog2.pop %v554
    %v556 = vmul.f32 %v555, 0.6931472
    %v557 = vadd.f32 %v556, %v480
    %v558 = vld [vmem:[#allocation7] sm:$0xff]
    %v559 = vld [vmem:[#allocation7 + $0x8] sm:$0xff]
    %v560 = vld [vmem:[#allocation7 + $0x10] sm:$0xff]
    %v561 = vld [vmem:[#allocation7 + $0x18] sm:$0xff]
    %v562 = vld [vmem:[#allocation7 + $0x20] sm:$0xff]
    %v563 = vld [vmem:[#allocation7 + $0x28] sm:$0xff]
    %v564 = vld [vmem:[#allocation7 + $0x30] sm:$0xff]
    %v565 = vld [vmem:[#allocation7 + $0x38] sm:$0xff]
    %v566 = vld [vmem:[#allocation7 + $0x40] sm:$0xff]
    %v567 = vld [vmem:[#allocation7 + $0x48] sm:$0xff]
    %v568 = vld [vmem:[#allocation7 + $0x50] sm:$0xff]
    %v569 = vld [vmem:[#allocation7 + $0x58] sm:$0xff]
    %v570 = vld [vmem:[#allocation7 + $0x60] sm:$0xff]
    %v571 = vld [vmem:[#allocation7 + $0x68] sm:$0xff]
    %v572 = vld [vmem:[#allocation7 + $0x70] sm:$0xff]
    %v573 = vld [vmem:[#allocation7 + $0x78] sm:$0xff]
    %574 = vmatprep.subr.mxu0 0.0
    %575 = vmatpush1.msra.mxu0 %v573
    %576 = vmatprep.subr.mxu0 0.0
    %577 = vmatpush1.msra.mxu0 %v572
    %578 = vmatprep.subr.mxu0 0.0
    %579 = vmatpush1.msra.mxu0 %v571
    %580 = vmatprep.subr.mxu0 0.0
    %581 = vmatpush1.msra.mxu0 %v570
    %582 = vmatprep.subr.mxu0 0.0
    %583 = vmatpush1.msra.mxu0 %v569
    %584 = vmatprep.subr.mxu0 0.0
    %585 = vmatpush1.msra.mxu0 %v568
    %586 = vmatprep.subr.mxu0 0.0
    %587 = vmatpush1.msra.mxu0 %v567
    %588 = vmatprep.subr.mxu0 0.0
    %589 = vmatpush1.msra.mxu0 %v566
    %590 = vmatprep.subr.mxu0 0.0
    %591 = vmatpush1.msra.mxu0 %v565
    %592 = vmatprep.subr.mxu0 0.0
    %593 = vmatpush1.msra.mxu0 %v564
    %594 = vmatprep.subr.mxu0 0.0
    %595 = vmatpush1.msra.mxu0 %v563
    %596 = vmatprep.subr.mxu0 0.0
    %597 = vmatpush1.msra.mxu0 %v562
    %598 = vmatprep.subr.mxu0 0.0
    %599 = vmatpush1.msra.mxu0 %v561
    %600 = vmatprep.subr.mxu0 0.0
    %601 = vmatpush1.msra.mxu0 %v560
    %602 = vmatprep.subr.mxu0 0.0
    %603 = vmatpush1.msra.mxu0 %v559
    %604 = vmatprep.subr.mxu0 0.0
    %605 = vmatpush1.msra.mxu0 %v558
    %606 = vmatprep.subr.mxu0 0.0
    %607 = vmatpush2.msra.mxu0 0.0
    %608 = vmatprep.subr.mxu0 0.0
    %609 = vmatpush2.msra.mxu0 0.0
    %610 = vmatprep.subr.mxu0 0.0
    %611 = vmatpush2.msra.mxu0 0.0
    %612 = vmatprep.subr.mxu0 0.0
    %613 = vmatpush2.msra.mxu0 0.0
    %614 = vmatprep.subr.mxu0 0.0
    %615 = vmatpush2.msra.mxu0 0.0
    %616 = vmatprep.subr.mxu0 0.0
    %617 = vmatpush2.msra.mxu0 0.0
    %618 = vmatprep.subr.mxu0 0.0
    %619 = vmatpush2.msra.mxu0 0.0
    %620 = vmatprep.subr.mxu0 0.0
    %621 = vmatpush2.msra.mxu0 0.0
    %622 = vmatprep.subr.mxu0 0.0
    %623 = vmatpush2.msra.mxu0 0.0
    %624 = vmatprep.subr.mxu0 0.0
    %625 = vmatpush2.msra.mxu0 0.0
    %626 = vmatprep.subr.mxu0 0.0
    %627 = vmatpush2.msra.mxu0 0.0
    %628 = vmatprep.subr.mxu0 0.0
    %629 = vmatpush2.msra.mxu0 0.0
    %630 = vmatprep.subr.mxu0 0.0
    %631 = vmatpush2.msra.mxu0 0.0
    %632 = vmatprep.subr.mxu0 0.0
    %633 = vmatpush2.msra.mxu0 0.0
    %634 = vmatprep.subr.mxu0 0.0
    %635 = vmatpush2.msra.mxu0 0.0
    %636 = vmatprep.subr.mxu0 0.0
    %637 = vmatpush2.msra.mxu0 0.0
    %638 = vmatprep.mubr.f32.mxu0 0.0
    %639 = vmatmul.mubr.f32.gmra.mxu0 %v432
    %v640 = vpop.f32.mrf.mxu0
    %v641 = vadd.f32 0.0, %v640
    %v642 = vpop.f32.mrf.mxu0
    %643 = vdwg.mxu0
    %v644 = vsel %vm459, %v557, 0.0
    %645 = vadd.xlane.f32.xlu0 %v644
    %v646 = vpop.xlane.xlu0 %645
    %vm647 = vcmp.eq.s32.totalorder %v217, 4
    %v648 = vsel %vm647, %v646, %v641
    %649 = vst [vmem:[#allocation10] sm:$0xff] %v648
    // Predicated region
    $region54: #{tpu_custom_call.1} parent=1 // pred_check
      _
    $region55: #{tpu_custom_call.1} parent=1 // pred_check_branch
      %651 = sbr.rel (0) target = $region57
    $region56: #{tpu_custom_call.1} parent=1 // pred_region
      %s653 = ssub.s32 128, 128
      %654 = vsyncadd [#allocation4], %s653
      %s656 = sshll.u32 [#allocation10], 4
      %s657 = int_to_ptr.vmem [resolvable:$true] %s656
      %659 = dma.vmem_to_hbm [thread:$0]  %s657, 128, %s9, [#allocation4]
    $region57: #{tpu_custom_call.1} parent=1 // pred_fallthru
      _
    // Predicated region
    $region58: #{tpu_custom_call.1} parent=1 // pred_check
      _
    $region59: #{tpu_custom_call.1} parent=1 // pred_check_branch
      %661 = sbr.rel (0) target = $region61
    $region60: #{tpu_custom_call.1} parent=1 // pred_region
      %662 = dma.done [#allocation4], 128
    $region61: #{tpu_custom_call.1} parent=1 // pred_fallthru
      _
    %663 = vsyncpa [#allocation3], 1
    %664 = vsyncpa [#allocation6], 1
    %665 = vsyncpa [#allocation9], 1
    %666 = vsyncpa [#allocation4], 1

</llo_original>
